<compile_context>
chip_gen: v7x
topology: tpu7x:2x2x1
jax: 0.10.0
libtpu: 0.0.40
codegen_flags: <defaults>
</compile_context>

<pallas_src>
import functools

import jax
import jax.numpy as jnp
from jax import lax
from jax.experimental import pallas as pl
from jax.experimental.pallas import tpu as pltpu


# ----------------------------------------------------------------------------
# Fused kernel: qkv 1x1 conv -> depthwise 3x3 -> channel attention -> proj_out
#   layout: channels on sublanes, flattened H*W on lanes (lane-dense).
# ----------------------------------------------------------------------------
def _attention_kernel(x_ref, wqkv_ref, wm_ref, wproj_ref, n_ref, rfull_ref,
                      bd_ref, o_ref, *, H, W, C):
    f32 = jnp.float32
    bf16 = jnp.bfloat16
    hw = H * W

    # ---- 1x1 qkv conv == channel matmul on the MXU (bf16 in, f32 acc) ----
    z = jnp.dot(wqkv_ref[...], x_ref[0].astype(bf16),
                preferred_element_type=f32)                    # (3C, HW) f32

    # ---- depthwise 3x3 (padding=1, groups=3C) via lane rolls (XLU) and
    #      pre-masked per-tap weights (one VPU mul-add per tap, f32). ----
    qkv = wm_ref[4] * z                                        # centre tap
    t = 0
    for dy in (-1, 0, 1):
        for dx in (-1, 0, 1):
            s = dy * W + dx
            if s != 0:
                # rolled[:, p] == z[:, (p + s) mod HW]; wrapped positions are
                # exactly the ones already zeroed inside wm_ref[t].
                rolled = pltpu.roll(z, (-s) % hw, axis=1)
                qkv = qkv + wm_ref[t] * rolled
            t += 1

    q = qkv[0:C, :]
    k = qkv[C:2 * C, :]
    v = qkv[2 * C:3 * C, :]

    # ---- L2 normalize over HW (torch F.normalize, eps=1e-12), EUP rsqrt ----
    qn = q * lax.rsqrt(jnp.maximum(jnp.sum(q * q, axis=-1, keepdims=True), 1e-24))
    kn = k * lax.rsqrt(jnp.maximum(jnp.sum(k * k, axis=-1, keepdims=True), 1e-24))

    # ---- all heads' q @ k^T in ONE stacked MXU matmul (block-diag wanted) ----
    big = lax.dot_general(qn.astype(bf16), kn.astype(bf16),
                          (((1,), (1,)), ((), ())),
                          preferred_element_type=f32)          # (C, C) f32
    bd = bd_ref[...]
    bigm = big * bd                                            # per-head blocks only

    # ---- 3x3 head-mixing conv as tiny structure-matrix matmuls (f32).
    #      temperature is folded into n_ref; result is the per-head conv
    #      output replicated across every column block. ----
    hconv = jnp.zeros_like(big)
    for t in range(3):
        yt = jnp.dot(bigm, rfull_ref[t], preferred_element_type=f32)
        hconv = hconv + jnp.dot(n_ref[t], yt, preferred_element_type=f32)

    # ---- softmax over each head's hd-wide block via additive off-block mask
    #      (32 live lanes; denominator through the EUP approx reciprocal). ----
    logits = hconv + (bd - 1.0) * 1e30
    m = jnp.max(logits, axis=-1, keepdims=True)
    e = jnp.exp(logits - m)                                    # off-block -> 0
    p = e * pl.reciprocal(jnp.sum(e, axis=-1, keepdims=True), approx=True)

    # ---- stacked block-diagonal attn @ v, then fused project_out (1x1). ----
    out = jnp.dot(p.astype(bf16), v.astype(bf16),
                  preferred_element_type=f32)                  # (C, HW)
    o_ref[0] = jnp.dot(wproj_ref[...], out.astype(bf16),
                       preferred_element_type=f32).astype(o_ref.dtype)


# ----------------------------------------------------------------------------
# Host-side precomputed operands (tiny, pure functions of weights / shapes)
# ----------------------------------------------------------------------------
def _dw_masks(h, w):
    """(9, h*w) 0/1 masks: validity of each 3x3 tap at every output pixel."""
    yy = jnp.arange(h)[:, None]
    xx = jnp.arange(w)[None, :]
    masks = []
    for dy in (-1, 0, 1):
        for dx in (-1, 0, 1):
            valid = ((yy + dy >= 0) & (yy + dy < h) &
                     (xx + dx >= 0) & (xx + dx < w))
            masks.append(valid.reshape(h * w).astype(jnp.float32))
    return jnp.stack(masks, axis=0)


def _masked_dw_weights(w_dw, h, w):
    """(9, 3C, HW) pre-masked depthwise tap weights: wm[t] = w[:, t] * mask[t]."""
    c3 = w_dw.shape[0]
    wdw9 = w_dw.reshape(c3, 9).T.astype(jnp.float32)            # (9, 3C)
    masks = _dw_masks(h, w)                                     # (9, HW)
    return wdw9[:, :, None] * masks[:, None, :]                 # (9, 3C, HW)


def _headconv_operands(w_head, temperature, num_heads, head_dim):
    """Structure matrices so the 3x3 head-mixing conv stays in (C, C) layout.

    hconv[o*hd+c, j*hd+e] = sum_t ( n_t @ ((big*bd) @ rfull_t) )[o*hd+c, j*hd+e]
                          = sum_{i,a,t} w[o,i,a,t] * temp[i] * attn_i[c+a-1, e+t-1]
    for every column block j (column-replicated), so a masked softmax over the
    full C columns equals the per-head softmax and feeds attn@v directly.
    """
    f32 = jnp.float32
    nh, hd = num_heads, head_dim
    C = nh * hd
    idx = jnp.arange(hd)
    offs = jnp.arange(3) - 1
    # shift_row[a, c, c'] = 1 iff c' == c + (a-1)
    shift_row = (idx[None, None, :] ==
                 idx[None, :, None] + offs[:, None, None]).astype(f32)
    n = jnp.einsum("oiab,acd->boicd", w_head.astype(f32), shift_row)
    n = n * temperature.astype(f32)[None, None, :, None, None]   # temp on head i
    n = n.transpose(0, 1, 3, 2, 4).reshape(3, C, C)               # (3, C, C)
    # r[b, e', e] = 1 iff e' == e + (b-1)  -> tiled over head blocks (both dims)
    r = (idx[None, :, None] ==
         idx[None, None, :] + offs[:, None, None]).astype(f32)    # (3, hd, hd)
    rfull = jnp.tile(r, (1, nh, nh))                               # (3, C, C)
    # BD[r, s] = 1 iff r//hd == s//hd
    h_of = jnp.arange(C) // hd
    bd = (h_of[:, None] == h_of[None, :]).astype(f32)              # (C, C)
    return n, rfull, bd


# ----------------------------------------------------------------------------
# Full forward pass (single fused pallas_call, grid over batch)
# ----------------------------------------------------------------------------
def attention_forward(x, params, *, num_heads):
    b, c, h, w = x.shape
    hw = h * w
    hd = c // num_heads
    f32 = jnp.float32
    bf16 = jnp.bfloat16

    x_flat = x.reshape(b, c, hw).astype(f32)
    w_qkv = params["w_qkv"].astype(bf16)                           # (3c, c)
    w_proj = params["w_proj"].astype(bf16)                         # (c, c)
    wm = _masked_dw_weights(params["w_dw"], h, w)                  # (9, 3c, hw)
    n, rfull, bd = _headconv_operands(
        params["w_head"], params["temperature"], num_heads, hd)

    kernel = functools.partial(_attention_kernel, H=h, W=w, C=c)
    out = pl.pallas_call(
        kernel,
        out_shape=jax.ShapeDtypeStruct((b, c, hw), f32),
        grid=(b,),
        in_specs=[
            pl.BlockSpec((1, c, hw), lambda i: (i, 0, 0)),         # x
            pl.BlockSpec((3 * c, c), lambda i: (0, 0)),            # w_qkv (bf16)
            pl.BlockSpec((9, 3 * c, hw), lambda i: (0, 0, 0)),     # masked dw taps
            pl.BlockSpec((c, c), lambda i: (0, 0)),                # w_proj (bf16)
            pl.BlockSpec((3, c, c), lambda i: (0, 0, 0)),          # n (head conv)
            pl.BlockSpec((3, c, c), lambda i: (0, 0, 0)),          # rfull
            pl.BlockSpec((c, c), lambda i: (0, 0)),                # block-diag mask
        ],
        out_specs=pl.BlockSpec((1, c, hw), lambda i: (i, 0, 0)),
        compiler_params=pltpu.CompilerParams(
            dimension_semantics=("parallel",),       # keeps both v7x TCs busy for b>=2
            vmem_limit_bytes=32 * 1024 * 1024,       # comfortable on v5e/v6e/v7x
        ),
    )(x_flat, w_qkv, wm, w_proj, n, rfull, bd)

    return out.reshape(b, c, h, w)


# ----------------------------------------------------------------------------
# Pure-JAX reference (sanity check of the Pallas implementation)
# ----------------------------------------------------------------------------
def reference_forward(x, params, *, num_heads):
    b, c, h, w = x.shape
    hd = c // num_heads
    qkv = jnp.einsum("oc,bchw->bohw", params["w_qkv"], x)
    qkv = lax.conv_general_dilated(
        qkv, params["w_dw"][:, None], (1, 1), ((1, 1), (1, 1)),
        dimension_numbers=("NCHW", "OIHW", "NCHW"),
        feature_group_count=3 * c)
    qkv = qkv.reshape(b, 3, num_heads, hd, h * w)
    q, k, v = qkv[:, 0], qkv[:, 1], qkv[:, 2]

    def l2norm(t):
        nrm = jnp.sqrt(jnp.sum(t * t, axis=-1, keepdims=True))
        return t / jnp.maximum(nrm, 1e-12)

    q = l2norm(q)
    k = l2norm(k)
    attn = jnp.einsum("bhcd,bhed->bhce", q, k)
    attn = attn * params["temperature"][None, :, None, None]
    attn = lax.conv_general_dilated(
        attn, params["w_head"], (1, 1), ((1, 1), (1, 1)),
        dimension_numbers=("NCHW", "OIHW", "NCHW"))
    attn = jax.nn.softmax(attn, axis=-1)
    out = jnp.einsum("bhce,bhed->bhcd", attn, v)
    out = out.reshape(b, c, h, w)
    out = jnp.einsum("oc,bchw->bohw", params["w_proj"], out)
    return out


if __name__ == "__main__":
    b, dim, num_heads, H, W = 2, 32, 4, 16, 16   # HW = 256 (lane-dense)

    key = jax.random.PRNGKey(0)
    k0, k1, k2, k3, k4 = jax.random.split(key, 5)
    params = {
        "w_qkv": 0.1 * jax.random.normal(k0, (3 * dim, dim), jnp.float32),
        "w_dw": 0.1 * jax.random.normal(k1, (3 * dim, 3, 3), jnp.float32),
        "w_head": 0.1 * jax.random.normal(k2, (num_heads, num_heads, 3, 3),
                                          jnp.float32),
        "w_proj": 0.1 * jax.random.normal(k3, (dim, dim), jnp.float32),
        "temperature": jnp.ones((num_heads,), jnp.float32),  # torch init: ones
    }
    x = jax.random.normal(k4, (b, dim, H, W), jnp.float32)

    fwd = jax.jit(functools.partial(attention_forward, num_heads=num_heads))
    out = jax.block_until_ready(fwd(x, params))

    ref = reference_forward(x, params, num_heads=num_heads)
    assert out.shape == (b, dim, H, W)
    # bf16 MXU inputs + approx reciprocal => ~1e-3-level deltas; 2e-2 tolerance.
    if not jnp.allclose(out, ref, atol=2e-2, rtol=2e-2):
        raise AssertionError("Pallas output does not match JAX reference")

    print("KERNEL_OK")
</pallas_src>

<mosaic_0001>
module attributes {stable_mosaic.version = 11 : i64} {
  func.func @_attention_kernel(%arg0: i32, %arg1: memref<1x32x256xf32, #tpu.memory_space<vmem>>, %arg2: memref<96x32xbf16, #tpu.memory_space<vmem>>, %arg3: memref<9x96x256xf32, #tpu.memory_space<vmem>>, %arg4: memref<32x32xbf16, #tpu.memory_space<vmem>>, %arg5: memref<3x32x32xf32, #tpu.memory_space<vmem>>, %arg6: memref<3x32x32xf32, #tpu.memory_space<vmem>>, %arg7: memref<32x32xf32, #tpu.memory_space<vmem>>, %arg8: memref<1x32x256xf32, #tpu.memory_space<vmem>>) attributes {dimension_semantics = [#tpu.dimension_semantics<parallel>], iteration_bounds = array<i64: 2>, scalar_prefetch = 0 : i64, scratch_operands = 0 : i64, tpu.core_type = #tpu.core_type<tc>, window_params = [{transform_indices = @transform_0, window_bounds = array<i64: 1, 32, 256>}, {pipeline_mode = #tpu.pipeline_mode<synchronous>, transform_indices = @transform_1, window_bounds = array<i64: 96, 32>}, {pipeline_mode = #tpu.pipeline_mode<synchronous>, transform_indices = @transform_2, window_bounds = array<i64: 9, 96, 256>}, {pipeline_mode = #tpu.pipeline_mode<synchronous>, transform_indices = @transform_3, window_bounds = array<i64: 32, 32>}, {pipeline_mode = #tpu.pipeline_mode<synchronous>, transform_indices = @transform_4, window_bounds = array<i64: 3, 32, 32>}, {pipeline_mode = #tpu.pipeline_mode<synchronous>, transform_indices = @transform_5, window_bounds = array<i64: 3, 32, 32>}, {pipeline_mode = #tpu.pipeline_mode<synchronous>, transform_indices = @transform_6, window_bounds = array<i64: 32, 32>}, {transform_indices = @transform_7, window_bounds = array<i64: 1, 32, 256>}]} {
    %c0 = arith.constant 0 : index
    %c0_0 = arith.constant 0 : index
    %0 = vector.load %arg2[%c0, %c0_0] : memref<96x32xbf16, #tpu.memory_space<vmem>>, vector<96x32xbf16>
    %c0_1 = arith.constant 0 : index
    %c0_2 = arith.constant 0 : index
    %c0_3 = arith.constant 0 : index
    %1 = vector.load %arg1[%c0_1, %c0_2, %c0_3] : memref<1x32x256xf32, #tpu.memory_space<vmem>>, vector<1x32x256xf32>
    %2 = vector.shape_cast %1 : vector<1x32x256xf32> to vector<32x256xf32>
    %3 = arith.truncf %2 : vector<32x256xf32> to vector<32x256xbf16>
    %cst = arith.constant dense<0.000000e+00> : vector<96x256xf32>
    %4 = tpu.matmul %0, %3, %cst {dimension_numbers = #tpu.dot_dimension_numbers<[1], [0], [0], [1], [0, 0, 1, 1], [], []>} : vector<96x32xbf16>, vector<32x256xbf16>, vector<96x256xf32> -> vector<96x256xf32>
    %c4 = arith.constant 4 : index
    %c0_4 = arith.constant 0 : index
    %c0_5 = arith.constant 0 : index
    %5 = vector.load %arg3[%c4, %c0_4, %c0_5] : memref<9x96x256xf32, #tpu.memory_space<vmem>>, vector<1x96x256xf32>
    %6 = vector.shape_cast %5 : vector<1x96x256xf32> to vector<96x256xf32>
    %7 = arith.mulf %6, %4 : vector<96x256xf32>
    %c17_i32 = arith.constant 17 : i32
    %8 = tpu.dynamic_rotate %4 by %c17_i32 dim 1 : vector<96x256xf32>, i32 -> vector<96x256xf32>
    %c0_6 = arith.constant 0 : index
    %c0_7 = arith.constant 0 : index
    %c0_8 = arith.constant 0 : index
    %9 = vector.load %arg3[%c0_6, %c0_7, %c0_8] : memref<9x96x256xf32, #tpu.memory_space<vmem>>, vector<1x96x256xf32>
    %10 = vector.shape_cast %9 : vector<1x96x256xf32> to vector<96x256xf32>
    %11 = arith.mulf %10, %8 : vector<96x256xf32>
    %12 = arith.addf %7, %11 : vector<96x256xf32>
    %c16_i32 = arith.constant 16 : i32
    %13 = tpu.dynamic_rotate %4 by %c16_i32 dim 1 : vector<96x256xf32>, i32 -> vector<96x256xf32>
    %c1 = arith.constant 1 : index
    %c0_9 = arith.constant 0 : index
    %c0_10 = arith.constant 0 : index
    %14 = vector.load %arg3[%c1, %c0_9, %c0_10] : memref<9x96x256xf32, #tpu.memory_space<vmem>>, vector<1x96x256xf32>
    %15 = vector.shape_cast %14 : vector<1x96x256xf32> to vector<96x256xf32>
    %16 = arith.mulf %15, %13 : vector<96x256xf32>
    %17 = arith.addf %12, %16 : vector<96x256xf32>
    %c15_i32 = arith.constant 15 : i32
    %18 = tpu.dynamic_rotate %4 by %c15_i32 dim 1 : vector<96x256xf32>, i32 -> vector<96x256xf32>
    %c2 = arith.constant 2 : index
    %c0_11 = arith.constant 0 : index
    %c0_12 = arith.constant 0 : index
    %19 = vector.load %arg3[%c2, %c0_11, %c0_12] : memref<9x96x256xf32, #tpu.memory_space<vmem>>, vector<1x96x256xf32>
    %20 = vector.shape_cast %19 : vector<1x96x256xf32> to vector<96x256xf32>
    %21 = arith.mulf %20, %18 : vector<96x256xf32>
    %22 = arith.addf %17, %21 : vector<96x256xf32>
    %c1_i32 = arith.constant 1 : i32
    %23 = tpu.dynamic_rotate %4 by %c1_i32 dim 1 : vector<96x256xf32>, i32 -> vector<96x256xf32>
    %c3 = arith.constant 3 : index
    %c0_13 = arith.constant 0 : index
    %c0_14 = arith.constant 0 : index
    %24 = vector.load %arg3[%c3, %c0_13, %c0_14] : memref<9x96x256xf32, #tpu.memory_space<vmem>>, vector<1x96x256xf32>
    %25 = vector.shape_cast %24 : vector<1x96x256xf32> to vector<96x256xf32>
    %26 = arith.mulf %25, %23 : vector<96x256xf32>
    %27 = arith.addf %22, %26 : vector<96x256xf32>
    %c255_i32 = arith.constant 255 : i32
    %28 = tpu.dynamic_rotate %4 by %c255_i32 dim 1 : vector<96x256xf32>, i32 -> vector<96x256xf32>
    %c5 = arith.constant 5 : index
    %c0_15 = arith.constant 0 : index
    %c0_16 = arith.constant 0 : index
    %29 = vector.load %arg3[%c5, %c0_15, %c0_16] : memref<9x96x256xf32, #tpu.memory_space<vmem>>, vector<1x96x256xf32>
    %30 = vector.shape_cast %29 : vector<1x96x256xf32> to vector<96x256xf32>
    %31 = arith.mulf %30, %28 : vector<96x256xf32>
    %32 = arith.addf %27, %31 : vector<96x256xf32>
    %c241_i32 = arith.constant 241 : i32
    %33 = tpu.dynamic_rotate %4 by %c241_i32 dim 1 : vector<96x256xf32>, i32 -> vector<96x256xf32>
    %c6 = arith.constant 6 : index
    %c0_17 = arith.constant 0 : index
    %c0_18 = arith.constant 0 : index
    %34 = vector.load %arg3[%c6, %c0_17, %c0_18] : memref<9x96x256xf32, #tpu.memory_space<vmem>>, vector<1x96x256xf32>
    %35 = vector.shape_cast %34 : vector<1x96x256xf32> to vector<96x256xf32>
    %36 = arith.mulf %35, %33 : vector<96x256xf32>
    %37 = arith.addf %32, %36 : vector<96x256xf32>
    %c240_i32 = arith.constant 240 : i32
    %38 = tpu.dynamic_rotate %4 by %c240_i32 dim 1 : vector<96x256xf32>, i32 -> vector<96x256xf32>
    %c7 = arith.constant 7 : index
    %c0_19 = arith.constant 0 : index
    %c0_20 = arith.constant 0 : index
    %39 = vector.load %arg3[%c7, %c0_19, %c0_20] : memref<9x96x256xf32, #tpu.memory_space<vmem>>, vector<1x96x256xf32>
    %40 = vector.shape_cast %39 : vector<1x96x256xf32> to vector<96x256xf32>
    %41 = arith.mulf %40, %38 : vector<96x256xf32>
    %42 = arith.addf %37, %41 : vector<96x256xf32>
    %c239_i32 = arith.constant 239 : i32
    %43 = tpu.dynamic_rotate %4 by %c239_i32 dim 1 : vector<96x256xf32>, i32 -> vector<96x256xf32>
    %c8 = arith.constant 8 : index
    %c0_21 = arith.constant 0 : index
    %c0_22 = arith.constant 0 : index
    %44 = vector.load %arg3[%c8, %c0_21, %c0_22] : memref<9x96x256xf32, #tpu.memory_space<vmem>>, vector<1x96x256xf32>
    %45 = vector.shape_cast %44 : vector<1x96x256xf32> to vector<96x256xf32>
    %46 = arith.mulf %45, %43 : vector<96x256xf32>
    %47 = arith.addf %42, %46 : vector<96x256xf32>
    %48 = vector.extract_strided_slice %47 {offsets = [0, 0], sizes = [32, 256], strides = [1, 1]} : vector<96x256xf32> to vector<32x256xf32>
    %49 = vector.extract_strided_slice %47 {offsets = [32, 0], sizes = [32, 256], strides = [1, 1]} : vector<96x256xf32> to vector<32x256xf32>
    %50 = vector.extract_strided_slice %47 {offsets = [64, 0], sizes = [32, 256], strides = [1, 1]} : vector<96x256xf32> to vector<32x256xf32>
    %51 = arith.mulf %48, %48 : vector<32x256xf32>
    %cst_23 = arith.constant dense<0.000000e+00> : vector<32xf32>
    %52 = vector.multi_reduction <add>, %51, %cst_23 [1] : vector<32x256xf32> to vector<32xf32>
    %53 = vector.shape_cast %52 : vector<32xf32> to vector<32x1xf32>
    %cst_24 = arith.constant 1.000000e-24 : f32
    %54 = vector.broadcast %cst_24 : f32 to vector<32x1xf32>
    %55 = arith.maximumf %53, %54 : vector<32x1xf32>
    %56 = math.rsqrt %55 : vector<32x1xf32>
    %57 = vector.broadcast %56 : vector<32x1xf32> to vector<32x256xf32>
    %58 = arith.mulf %48, %57 : vector<32x256xf32>
    %59 = arith.mulf %49, %49 : vector<32x256xf32>
    %cst_25 = arith.constant dense<0.000000e+00> : vector<32xf32>
    %60 = vector.multi_reduction <add>, %59, %cst_25 [1] : vector<32x256xf32> to vector<32xf32>
    %61 = vector.shape_cast %60 : vector<32xf32> to vector<32x1xf32>
    %cst_26 = arith.constant 1.000000e-24 : f32
    %62 = vector.broadcast %cst_26 : f32 to vector<32x1xf32>
    %63 = arith.maximumf %61, %62 : vector<32x1xf32>
    %64 = math.rsqrt %63 : vector<32x1xf32>
    %65 = vector.broadcast %64 : vector<32x1xf32> to vector<32x256xf32>
    %66 = arith.mulf %49, %65 : vector<32x256xf32>
    %67 = arith.truncf %58 : vector<32x256xf32> to vector<32x256xbf16>
    %68 = arith.truncf %66 : vector<32x256xf32> to vector<32x256xbf16>
    %cst_27 = arith.constant dense<0.000000e+00> : vector<32x32xf32>
    %69 = tpu.matmul %67, %68, %cst_27 {dimension_numbers = #tpu.dot_dimension_numbers<[1], [1], [0], [0], [0, 0, 1, 0], [], []>} : vector<32x256xbf16>, vector<32x256xbf16>, vector<32x32xf32> -> vector<32x32xf32>
    %c0_28 = arith.constant 0 : index
    %c0_29 = arith.constant 0 : index
    %70 = vector.load %arg7[%c0_28, %c0_29] : memref<32x32xf32, #tpu.memory_space<vmem>>, vector<32x32xf32>
    %71 = arith.mulf %69, %70 : vector<32x32xf32>
    %cst_30 = arith.constant 0.000000e+00 : f32
    %72 = vector.broadcast %cst_30 : f32 to vector<32x32xf32>
    %c0_31 = arith.constant 0 : index
    %c0_32 = arith.constant 0 : index
    %c0_33 = arith.constant 0 : index
    %73 = vector.load %arg6[%c0_31, %c0_32, %c0_33] : memref<3x32x32xf32, #tpu.memory_space<vmem>>, vector<1x32x32xf32>
    %74 = vector.shape_cast %73 : vector<1x32x32xf32> to vector<32x32xf32>
    %cst_34 = arith.constant dense<0.000000e+00> : vector<32x32xf32>
    %75 = tpu.matmul %71, %74, %cst_34 {dimension_numbers = #tpu.dot_dimension_numbers<[1], [0], [0], [1], [0, 0, 1, 1], [], []>} : vector<32x32xf32>, vector<32x32xf32>, vector<32x32xf32> -> vector<32x32xf32>
    %c0_35 = arith.constant 0 : index
    %c0_36 = arith.constant 0 : index
    %c0_37 = arith.constant 0 : index
    %76 = vector.load %arg5[%c0_35, %c0_36, %c0_37] : memref<3x32x32xf32, #tpu.memory_space<vmem>>, vector<1x32x32xf32>
    %77 = vector.shape_cast %76 : vector<1x32x32xf32> to vector<32x32xf32>
    %cst_38 = arith.constant dense<0.000000e+00> : vector<32x32xf32>
    %78 = tpu.matmul %77, %75, %cst_38 {dimension_numbers = #tpu.dot_dimension_numbers<[1], [0], [0], [1], [0, 0, 1, 1], [], []>} : vector<32x32xf32>, vector<32x32xf32>, vector<32x32xf32> -> vector<32x32xf32>
    %79 = arith.addf %72, %78 : vector<32x32xf32>
    %c1_39 = arith.constant 1 : index
    %c0_40 = arith.constant 0 : index
    %c0_41 = arith.constant 0 : index
    %80 = vector.load %arg6[%c1_39, %c0_40, %c0_41] : memref<3x32x32xf32, #tpu.memory_space<vmem>>, vector<1x32x32xf32>
    %81 = vector.shape_cast %80 : vector<1x32x32xf32> to vector<32x32xf32>
    %cst_42 = arith.constant dense<0.000000e+00> : vector<32x32xf32>
    %82 = tpu.matmul %71, %81, %cst_42 {dimension_numbers = #tpu.dot_dimension_numbers<[1], [0], [0], [1], [0, 0, 1, 1], [], []>} : vector<32x32xf32>, vector<32x32xf32>, vector<32x32xf32> -> vector<32x32xf32>
    %c1_43 = arith.constant 1 : index
    %c0_44 = arith.constant 0 : index
    %c0_45 = arith.constant 0 : index
    %83 = vector.load %arg5[%c1_43, %c0_44, %c0_45] : memref<3x32x32xf32, #tpu.memory_space<vmem>>, vector<1x32x32xf32>
    %84 = vector.shape_cast %83 : vector<1x32x32xf32> to vector<32x32xf32>
    %cst_46 = arith.constant dense<0.000000e+00> : vector<32x32xf32>
    %85 = tpu.matmul %84, %82, %cst_46 {dimension_numbers = #tpu.dot_dimension_numbers<[1], [0], [0], [1], [0, 0, 1, 1], [], []>} : vector<32x32xf32>, vector<32x32xf32>, vector<32x32xf32> -> vector<32x32xf32>
    %86 = arith.addf %79, %85 : vector<32x32xf32>
    %c2_47 = arith.constant 2 : index
    %c0_48 = arith.constant 0 : index
    %c0_49 = arith.constant 0 : index
    %87 = vector.load %arg6[%c2_47, %c0_48, %c0_49] : memref<3x32x32xf32, #tpu.memory_space<vmem>>, vector<1x32x32xf32>
    %88 = vector.shape_cast %87 : vector<1x32x32xf32> to vector<32x32xf32>
    %cst_50 = arith.constant dense<0.000000e+00> : vector<32x32xf32>
    %89 = tpu.matmul %71, %88, %cst_50 {dimension_numbers = #tpu.dot_dimension_numbers<[1], [0], [0], [1], [0, 0, 1, 1], [], []>} : vector<32x32xf32>, vector<32x32xf32>, vector<32x32xf32> -> vector<32x32xf32>
    %c2_51 = arith.constant 2 : index
    %c0_52 = arith.constant 0 : index
    %c0_53 = arith.constant 0 : index
    %90 = vector.load %arg5[%c2_51, %c0_52, %c0_53] : memref<3x32x32xf32, #tpu.memory_space<vmem>>, vector<1x32x32xf32>
    %91 = vector.shape_cast %90 : vector<1x32x32xf32> to vector<32x32xf32>
    %cst_54 = arith.constant dense<0.000000e+00> : vector<32x32xf32>
    %92 = tpu.matmul %91, %89, %cst_54 {dimension_numbers = #tpu.dot_dimension_numbers<[1], [0], [0], [1], [0, 0, 1, 1], [], []>} : vector<32x32xf32>, vector<32x32xf32>, vector<32x32xf32> -> vector<32x32xf32>
    %93 = arith.addf %86, %92 : vector<32x32xf32>
    %cst_55 = arith.constant 1.000000e+00 : f32
    %94 = vector.broadcast %cst_55 : f32 to vector<32x32xf32>
    %95 = arith.subf %70, %94 : vector<32x32xf32>
    %cst_56 = arith.constant 1.000000e+30 : f32
    %96 = vector.broadcast %cst_56 : f32 to vector<32x32xf32>
    %97 = arith.mulf %95, %96 : vector<32x32xf32>
    %98 = arith.addf %93, %97 : vector<32x32xf32>
    %cst_57 = arith.constant dense<0xFF800000> : vector<32xf32>
    %99 = vector.multi_reduction <maximumf>, %98, %cst_57 [1] : vector<32x32xf32> to vector<32xf32>
    %100 = vector.shape_cast %99 : vector<32xf32> to vector<32x1xf32>
    %101 = vector.broadcast %100 : vector<32x1xf32> to vector<32x32xf32>
    %102 = arith.subf %98, %101 : vector<32x32xf32>
    %103 = math.exp %102 : vector<32x32xf32>
    %cst_58 = arith.constant dense<0.000000e+00> : vector<32xf32>
    %104 = vector.multi_reduction <add>, %103, %cst_58 [1] : vector<32x32xf32> to vector<32xf32>
    %105 = vector.shape_cast %104 : vector<32xf32> to vector<32x1xf32>
    %106 = tpu.reciprocal %105 {approx = true} : vector<32x1xf32> -> vector<32x1xf32>
    %107 = vector.broadcast %106 : vector<32x1xf32> to vector<32x32xf32>
    %108 = arith.mulf %103, %107 : vector<32x32xf32>
    %109 = arith.truncf %108 : vector<32x32xf32> to vector<32x32xbf16>
    %110 = arith.truncf %50 : vector<32x256xf32> to vector<32x256xbf16>
    %cst_59 = arith.constant dense<0.000000e+00> : vector<32x256xf32>
    %111 = tpu.matmul %109, %110, %cst_59 {dimension_numbers = #tpu.dot_dimension_numbers<[1], [0], [0], [1], [0, 0, 1, 1], [], []>} : vector<32x32xbf16>, vector<32x256xbf16>, vector<32x256xf32> -> vector<32x256xf32>
    %c0_60 = arith.constant 0 : index
    %c0_61 = arith.constant 0 : index
    %112 = vector.load %arg4[%c0_60, %c0_61] : memref<32x32xbf16, #tpu.memory_space<vmem>>, vector<32x32xbf16>
    %113 = arith.truncf %111 : vector<32x256xf32> to vector<32x256xbf16>
    %cst_62 = arith.constant dense<0.000000e+00> : vector<32x256xf32>
    %114 = tpu.matmul %112, %113, %cst_62 {dimension_numbers = #tpu.dot_dimension_numbers<[1], [0], [0], [1], [0, 0, 1, 1], [], []>} : vector<32x32xbf16>, vector<32x256xbf16>, vector<32x256xf32> -> vector<32x256xf32>
    %c0_63 = arith.constant 0 : index
    %c0_64 = arith.constant 0 : index
    %c0_65 = arith.constant 0 : index
    %115 = vector.load %arg8[%c0_63, %c0_64, %c0_65] : memref<1x32x256xf32, #tpu.memory_space<vmem>>, vector<1x32x256xf32>
    %116 = vector.shape_cast %115 : vector<1x32x256xf32> to vector<32x256xf32>
    %117 = vector.shape_cast %114 : vector<32x256xf32> to vector<1x32x256xf32>
    tpu.vector_store %arg8[%c0_63, %c0_64, %c0_65], %117 {strides = array<i32>} : memref<1x32x256xf32, #tpu.memory_space<vmem>>, vector<1x32x256xf32>,
    return
  }
  func.func @transform_0(%arg0: i32) -> (i32, i32, i32) {
    %c0_i32 = arith.constant 0 : i32
    %c0_i32_0 = arith.constant 0 : i32
    %c0_i32_1 = arith.constant 0 : i32
    return %arg0, %c0_i32, %c0_i32_0 : i32, i32, i32
  }
  func.func @transform_1(%arg0: i32) -> (i32, i32) {
    %c0_i32 = arith.constant 0 : i32
    %c0_i32_0 = arith.constant 0 : i32
    %c0_i32_1 = arith.constant 0 : i32
    return %c0_i32, %c0_i32_0 : i32, i32
  }
  func.func @transform_2(%arg0: i32) -> (i32, i32, i32) {
    %c0_i32 = arith.constant 0 : i32
    %c0_i32_0 = arith.constant 0 : i32
    %c0_i32_1 = arith.constant 0 : i32
    %c0_i32_2 = arith.constant 0 : i32
    return %c0_i32, %c0_i32_0, %c0_i32_1 : i32, i32, i32
  }
  func.func @transform_3(%arg0: i32) -> (i32, i32) {
    %c0_i32 = arith.constant 0 : i32
    %c0_i32_0 = arith.constant 0 : i32
    %c0_i32_1 = arith.constant 0 : i32
    return %c0_i32, %c0_i32_0 : i32, i32
  }
  func.func @transform_4(%arg0: i32) -> (i32, i32, i32) {
    %c0_i32 = arith.constant 0 : i32
    %c0_i32_0 = arith.constant 0 : i32
    %c0_i32_1 = arith.constant 0 : i32
    %c0_i32_2 = arith.constant 0 : i32
    return %c0_i32, %c0_i32_0, %c0_i32_1 : i32, i32, i32
  }
  func.func @transform_5(%arg0: i32) -> (i32, i32, i32) {
    %c0_i32 = arith.constant 0 : i32
    %c0_i32_0 = arith.constant 0 : i32
    %c0_i32_1 = arith.constant 0 : i32
    %c0_i32_2 = arith.constant 0 : i32
    return %c0_i32, %c0_i32_0, %c0_i32_1 : i32, i32, i32
  }
  func.func @transform_6(%arg0: i32) -> (i32, i32) {
    %c0_i32 = arith.constant 0 : i32
    %c0_i32_0 = arith.constant 0 : i32
    %c0_i32_1 = arith.constant 0 : i32
    return %c0_i32, %c0_i32_0 : i32, i32
  }
  func.func @transform_7(%arg0: i32) -> (i32, i32, i32) {
    %c0_i32 = arith.constant 0 : i32
    %c0_i32_0 = arith.constant 0 : i32
    %c0_i32_1 = arith.constant 0 : i32
    return %arg0, %c0_i32, %c0_i32_0 : i32, i32, i32
  }
}

</mosaic_0001>

<llo_original>
// kernel: attention_forward.1
$region0: #{attention_forward.1}
  #allocation0 [shape = 'u32[]', space=smem, size = 0x4, offset = 0x4, fixed_abs, tag = 'smem constant byte address 0x4 - core index']
  #allocation1 [shape = 'u32[144,128]{1,0:T(1,128)}', space=vmem, size = 0x12000, scoped, tag = 'internal scratch']
  %s0 = inlined_call_operand.vmem [shape: f32[2,32,256], index: 0, kind: input, shape index: {}]
  %s1 = inlined_call_operand.vmem [shape: bf16[96,32], index: 1, kind: input, shape index: {}]
  %s2 = inlined_call_operand.vmem [shape: f32[9,96,256], index: 2, kind: input, shape index: {}]
  %s3 = inlined_call_operand.vmem [shape: bf16[32,32], index: 3, kind: input, shape index: {}]
  %s4 = inlined_call_operand.vmem [shape: f32[3,32,32], index: 4, kind: input, shape index: {}]
  %s5 = inlined_call_operand.vmem [shape: f32[3,32,32], index: 5, kind: input, shape index: {}]
  %s6 = inlined_call_operand.vmem [shape: f32[32,32], index: 6, kind: input, shape index: {}]
  %s7 = inlined_call_operand.vmem [shape: f32[2,32,256], index: 7, kind: output, shape index: {}]
  %s8 = sld [smem:[#allocation0]]
  $region61: #{attention_forward.1} parent=0
    _
  %s10 = ssub.s32 1, %s8
  %s11 = scalar_select 0, %s10, %s8
  loop: start=0, step=1, limit=4
  $region2: #{attention_forward.1} parent=0 // loop_pre_header
    _
  $region3: #{attention_forward.1} parent=0 // loop_header
    %s13 = sphi 0, %s17
    %p14 = scmp.ge.s32.totalorder %s13, 4
    %s23 = sphi 0, %s25
    %s26 = sphi 0, %s23
    %s27 = sphi 0, %s26
    %s43 = sphi 0, %s27
    %s47 = sphi 0, %s47
    %s49 = sphi 0, %s47
    %s50 = sphi 0, %s49
    %s64 = sphi 0, %s50
    %s68 = sphi 0, %s68
    %s70 = sphi 0, %s68
    %s71 = sphi 0, %s70
    %s85 = sphi 0, %s71
    %s89 = sphi 0, %s89
    %s91 = sphi 0, %s89
    %s92 = sphi 0, %s91
    %s106 = sphi 0, %s92
    %s110 = sphi 0, %s110
    %s112 = sphi 0, %s110
    %s113 = sphi 0, %s112
    %s127 = sphi 0, %s113
    %s131 = sphi 0, %s131
    %s133 = sphi 0, %s131
    %s134 = sphi 0, %s133
    %s148 = sphi 0, %s134
    %s152 = sphi 0, %s152
    %s154 = sphi 0, %s152
    %s155 = sphi 0, %s154
    %s169 = sphi 0, %s155
    %s175 = sphi 0, %s177
    %s178 = sphi 0, %s175
    %s179 = sphi 0, %s178
    %s195 = sphi 0, %s179
  $region4: #{attention_forward.1} parent=0 // loop_header_branch
    %16 = sbr.rel (%p14) target = $region8
  $region5: #{attention_forward.1} parent=0 // loop_body
    %s18 = ssub.s32 %s13, 1
    %s19 = ssub.s32 %s13, 2
    %s20 = sadd.s32 %s13, 1
    %s21 = ssub.s32 %s13, %s20
    %p22 = scmp.eq.s32.totalorder %s21, 0
    %s24 = sadd.s32 %s23, 1
    %s25 = scalar_select %p22, %s23, %s24
    %p28 = pneg %p22
    %p29 = scmp.eq.s32.totalorder %s13, 1
    %p30 = por %p28, %p29
    %p31 = scmp.ne.s32.totalorder %s23, %s26
    %p32 = scmp.eq.s32.totalorder %s13, 0
    %p33 = por %p31, %p32
    %p34 = scmp.ne.s32.totalorder %s23, %s26
    %p35 = scmp.eq.s32.totalorder %s18, 1
    %p36 = por %p34, %p35
    %p37 = scmp.ne.s32.totalorder %s26, %s27
    %p38 = scmp.eq.s32.totalorder %s18, 0
    %p39 = por %p37, %p38
    %p40 = scmp.ne.s32.totalorder %s26, %s27
    %p41 = scmp.eq.s32.totalorder %s19, 1
    %p42 = por %p40, %p41
    %p44 = scmp.ne.s32.totalorder %s27, %s43
    %p45 = scmp.eq.s32.totalorder %s19, 0
    %p46 = por %p44, %p45
    %s48 = sadd.s32 %s47, 1
    %p51 = scmp.eq.s32.totalorder %s13, 1
    %p52 = scmp.ne.s32.totalorder %s47, %s49
    %p53 = scmp.eq.s32.totalorder %s13, 0
    %p54 = por %p52, %p53
    %p55 = scmp.ne.s32.totalorder %s47, %s49
    %p56 = scmp.eq.s32.totalorder %s18, 1
    %p57 = por %p55, %p56
    %p58 = scmp.ne.s32.totalorder %s49, %s50
    %p59 = scmp.eq.s32.totalorder %s18, 0
    %p60 = por %p58, %p59
    %p61 = scmp.ne.s32.totalorder %s49, %s50
    %p62 = scmp.eq.s32.totalorder %s19, 1
    %p63 = por %p61, %p62
    %p65 = scmp.ne.s32.totalorder %s50, %s64
    %p66 = scmp.eq.s32.totalorder %s19, 0
    %p67 = por %p65, %p66
    %s69 = sadd.s32 %s68, 1
    %p72 = scmp.eq.s32.totalorder %s13, 1
    %p73 = scmp.ne.s32.totalorder %s68, %s70
    %p74 = scmp.eq.s32.totalorder %s13, 0
    %p75 = por %p73, %p74
    %p76 = scmp.ne.s32.totalorder %s68, %s70
    %p77 = scmp.eq.s32.totalorder %s18, 1
    %p78 = por %p76, %p77
    %p79 = scmp.ne.s32.totalorder %s70, %s71
    %p80 = scmp.eq.s32.totalorder %s18, 0
    %p81 = por %p79, %p80
    %p82 = scmp.ne.s32.totalorder %s70, %s71
    %p83 = scmp.eq.s32.totalorder %s19, 1
    %p84 = por %p82, %p83
    %p86 = scmp.ne.s32.totalorder %s71, %s85
    %p87 = scmp.eq.s32.totalorder %s19, 0
    %p88 = por %p86, %p87
    %s90 = sadd.s32 %s89, 1
    %p93 = scmp.eq.s32.totalorder %s13, 1
    %p94 = scmp.ne.s32.totalorder %s89, %s91
    %p95 = scmp.eq.s32.totalorder %s13, 0
    %p96 = por %p94, %p95
    %p97 = scmp.ne.s32.totalorder %s89, %s91
    %p98 = scmp.eq.s32.totalorder %s18, 1
    %p99 = por %p97, %p98
    %p100 = scmp.ne.s32.totalorder %s91, %s92
    %p101 = scmp.eq.s32.totalorder %s18, 0
    %p102 = por %p100, %p101
    %p103 = scmp.ne.s32.totalorder %s91, %s92
    %p104 = scmp.eq.s32.totalorder %s19, 1
    %p105 = por %p103, %p104
    %p107 = scmp.ne.s32.totalorder %s92, %s106
    %p108 = scmp.eq.s32.totalorder %s19, 0
    %p109 = por %p107, %p108
    %s111 = sadd.s32 %s110, 1
    %p114 = scmp.eq.s32.totalorder %s13, 1
    %p115 = scmp.ne.s32.totalorder %s110, %s112
    %p116 = scmp.eq.s32.totalorder %s13, 0
    %p117 = por %p115, %p116
    %p118 = scmp.ne.s32.totalorder %s110, %s112
    %p119 = scmp.eq.s32.totalorder %s18, 1
    %p120 = por %p118, %p119
    %p121 = scmp.ne.s32.totalorder %s112, %s113
    %p122 = scmp.eq.s32.totalorder %s18, 0
    %p123 = por %p121, %p122
    %p124 = scmp.ne.s32.totalorder %s112, %s113
    %p125 = scmp.eq.s32.totalorder %s19, 1
    %p126 = por %p124, %p125
    %p128 = scmp.ne.s32.totalorder %s113, %s127
    %p129 = scmp.eq.s32.totalorder %s19, 0
    %p130 = por %p128, %p129
    %s132 = sadd.s32 %s131, 1
    %p135 = scmp.eq.s32.totalorder %s13, 1
    %p136 = scmp.ne.s32.totalorder %s131, %s133
    %p137 = scmp.eq.s32.totalorder %s13, 0
    %p138 = por %p136, %p137
    %p139 = scmp.ne.s32.totalorder %s131, %s133
    %p140 = scmp.eq.s32.totalorder %s18, 1
    %p141 = por %p139, %p140
    %p142 = scmp.ne.s32.totalorder %s133, %s134
    %p143 = scmp.eq.s32.totalorder %s18, 0
    %p144 = por %p142, %p143
    %p145 = scmp.ne.s32.totalorder %s133, %s134
    %p146 = scmp.eq.s32.totalorder %s19, 1
    %p147 = por %p145, %p146
    %p149 = scmp.ne.s32.totalorder %s134, %s148
    %p150 = scmp.eq.s32.totalorder %s19, 0
    %p151 = por %p149, %p150
    %s153 = sadd.s32 %s152, 1
    %p156 = scmp.eq.s32.totalorder %s13, 1
    %p157 = scmp.ne.s32.totalorder %s152, %s154
    %p158 = scmp.eq.s32.totalorder %s13, 0
    %p159 = por %p157, %p158
    %p160 = scmp.ne.s32.totalorder %s152, %s154
    %p161 = scmp.eq.s32.totalorder %s18, 1
    %p162 = por %p160, %p161
    %p163 = scmp.ne.s32.totalorder %s154, %s155
    %p164 = scmp.eq.s32.totalorder %s18, 0
    %p165 = por %p163, %p164
    %p166 = scmp.ne.s32.totalorder %s154, %s155
    %p167 = scmp.eq.s32.totalorder %s19, 1
    %p168 = por %p166, %p167
    %p170 = scmp.ne.s32.totalorder %s155, %s169
    %p171 = scmp.eq.s32.totalorder %s19, 0
    %p172 = por %p170, %p171
    %s173 = ssub.s32 %s13, %s20
    %p174 = scmp.eq.s32.totalorder %s173, 0
    %s176 = sadd.s32 %s175, 1
    %s177 = scalar_select %p174, %s175, %s176
    %p180 = pneg %p174
    %p181 = scmp.eq.s32.totalorder %s13, 1
    %p182 = por %p180, %p181
    %p183 = scmp.ne.s32.totalorder %s175, %s178
    %p184 = scmp.eq.s32.totalorder %s13, 0
    %p185 = por %p183, %p184
    %p186 = scmp.ne.s32.totalorder %s175, %s178
    %p187 = scmp.eq.s32.totalorder %s18, 1
    %p188 = por %p186, %p187
    %p189 = scmp.ne.s32.totalorder %s178, %s179
    %p190 = scmp.eq.s32.totalorder %s18, 0
    %p191 = por %p189, %p190
    %p192 = scmp.ne.s32.totalorder %s178, %s179
    %p193 = scmp.eq.s32.totalorder %s19, 1
    %p194 = por %p192, %p193
    %p196 = scmp.ne.s32.totalorder %s179, %s195
    %p197 = scmp.eq.s32.totalorder %s19, 0
    %p198 = por %p196, %p197
    %p199 = scmp.le.s32.totalorder 1, %s13
    %p200 = scmp.lt.s32.totalorder %s13, 3
    %p201 = pnand %p199, %p200
    %p202 = pneg %p201
    // Predicated region
    $region9: #{attention_forward.1} parent=5 // pred_check
      _
    $region10: #{attention_forward.1} parent=5 // pred_check_branch
      %204 = sbr.rel (%p201) target = $region12
    $region11: #{attention_forward.1} parent=5 // pred_region
      %s205 = ssub.s32 %s13, 1
      // Predicated region
      $region13: #{attention_forward.1} parent=11 // pred_check
        %p206 = pneg %p60
      $region14: #{attention_forward.1} parent=11 // pred_check_branch
        %208 = sbr.rel (%p206) target = $region16
      $region15: #{attention_forward.1} parent=11 // pred_region
        _
      $region16: #{attention_forward.1} parent=11 // pred_fallthru
        _
      // Predicated region
      $region17: #{attention_forward.1} parent=11 // pred_check
        %p209 = pneg %p81
      $region18: #{attention_forward.1} parent=11 // pred_check_branch
        %211 = sbr.rel (%p209) target = $region20
      $region19: #{attention_forward.1} parent=11 // pred_region
        _
      $region20: #{attention_forward.1} parent=11 // pred_fallthru
        _
      // Predicated region
      $region21: #{attention_forward.1} parent=11 // pred_check
        %p212 = pneg %p102
      $region22: #{attention_forward.1} parent=11 // pred_check_branch
        %214 = sbr.rel (%p212) target = $region24
      $region23: #{attention_forward.1} parent=11 // pred_region
        _
      $region24: #{attention_forward.1} parent=11 // pred_fallthru
        _
      // Predicated region
      $region25: #{attention_forward.1} parent=11 // pred_check
        %p215 = pneg %p123
      $region26: #{attention_forward.1} parent=11 // pred_check_branch
        %217 = sbr.rel (%p215) target = $region28
      $region27: #{attention_forward.1} parent=11 // pred_region
        _
      $region28: #{attention_forward.1} parent=11 // pred_fallthru
        _
      // Predicated region
      $region29: #{attention_forward.1} parent=11 // pred_check
        %p218 = pneg %p144
      $region30: #{attention_forward.1} parent=11 // pred_check_branch
        %220 = sbr.rel (%p218) target = $region32
      $region31: #{attention_forward.1} parent=11 // pred_region
        _
      $region32: #{attention_forward.1} parent=11 // pred_fallthru
        _
      // Predicated region
      $region33: #{attention_forward.1} parent=11 // pred_check
        %p221 = pneg %p165
      $region34: #{attention_forward.1} parent=11 // pred_check_branch
        %223 = sbr.rel (%p221) target = $region36
      $region35: #{attention_forward.1} parent=11 // pred_region
        _
      $region36: #{attention_forward.1} parent=11 // pred_fallthru
        _
    $region12: #{attention_forward.1} parent=5 // pred_fallthru
      _
    %p224 = scmp.lt.s32.totalorder %s13, 2
    // Predicated region
    $region37: #{attention_forward.1} parent=5 // pred_check
      %p225 = pneg %p224
    $region38: #{attention_forward.1} parent=5 // pred_check_branch
      %227 = sbr.rel (%p225) target = $region40
    $region39: #{attention_forward.1} parent=5 // pred_region
      // Predicated region
      $region41: #{attention_forward.1} parent=39 // pred_check
        %p228 = pneg %p33
      $region42: #{attention_forward.1} parent=39 // pred_check_branch
        %230 = sbr.rel (%p228) target = $region44
      $region43: #{attention_forward.1} parent=39 // pred_region
        %p231 = scmp.lt.s32.totalorder %s13, 1
        %s232 = scalar_select %p231, %s13, 1
        %s233 = smul.addr %s232, 8
        %s234 = smul.addr %s233, 8
        %s235 = scalar_lea.vmem %s0, %s234
      $region44: #{attention_forward.1} parent=39 // pred_fallthru
        _
    $region40: #{attention_forward.1} parent=5 // pred_fallthru
      _
    %p236 = scmp.le.s32.totalorder 1, %s13
    %p237 = scmp.lt.s32.totalorder %s13, 3
    %p238 = pnand %p236, %p237
    %p239 = pneg %p238
    // Predicated region
    $region45: #{attention_forward.1} parent=5 // pred_check
      _
    $region46: #{attention_forward.1} parent=5 // pred_check_branch
      %241 = sbr.rel (%p238) target = $region48
    $region47: #{attention_forward.1} parent=5 // pred_region
      %s242 = ssub.s32 %s13, 1
      %p243 = scmp.lt.s32.totalorder %s18, 1
      %s244 = scalar_select %p243, %s18, 1
      %s245 = smul.addr %s244, 8
      %s246 = smul.addr %s245, 8
      %s247 = scalar_lea.vmem %s0, %s246
      %p248 = pneg %p39
      %p249 = pneg %p36
      %p250 = pneg %p60
      %p251 = pneg %p57
      %p252 = pneg %p81
      %p253 = pneg %p78
      %p254 = pneg %p102
      %p255 = pneg %p99
      %p256 = pneg %p123
      %p257 = pneg %p120
      %p258 = pneg %p144
      %p259 = pneg %p141
      %p260 = pneg %p165
      %p261 = pneg %p162
      %p262 = pneg %p191
      %p263 = pneg %p188
      %p264 = scmp.lt.s32.totalorder %s18, 1
      %s265 = scalar_select %p264, %s18, 1
      %s266 = smul.addr %s265, 8
      %s267 = smul.addr %s266, 8
      %s268 = scalar_lea.vmem %s7, %s267
      %p269 = scmp.lt.s32.totalorder %s18, 1
      %s270 = scalar_select %p269, %s18, 1
      %s271 = smul.addr %s270, 8
      %s272 = smul.addr %s271, 8
      %s273 = scalar_lea.vmem %s0, %s272
      %p274 = scmp.lt.s32.totalorder %s18, 1
      %s275 = scalar_select %p274, %s18, 1
      %s276 = smul.addr %s275, 8
      %s277 = smul.addr %s276, 8
      %s278 = scalar_lea.vmem %s7, %s277
      %v280 = vld [vmem:[%s1] sm:$0xf]
      %v281 = vld [vmem:[%s1 + $0x4] sm:$0xf]
      %v282 = vld [vmem:[%s1 + $0x8] sm:$0xf]
      %v283 = vld [vmem:[%s1 + $0xc] sm:$0xf]
      %v284 = vld [vmem:[%s1 + $0x10] sm:$0xf]
      %v285 = vld [vmem:[%s1 + $0x14] sm:$0xf]
      %v286 = vld [vmem:[%s1 + $0x18] sm:$0xf]
      %v287 = vld [vmem:[%s1 + $0x1c] sm:$0xf]
      %v288 = vld [vmem:[%s1 + $0x20] sm:$0xf]
      %v289 = vld [vmem:[%s1 + $0x24] sm:$0xf]
      %v290 = vld [vmem:[%s1 + $0x28] sm:$0xf]
      %v291 = vld [vmem:[%s1 + $0x2c] sm:$0xf]
      %v292 = vld [vmem:[%s273] sm:$0xff]
      %v293 = vld [vmem:[%s273 + $0x8] sm:$0xff]
      %v294 = vld [vmem:[%s273 + $0x10] sm:$0xff]
      %v295 = vld [vmem:[%s273 + $0x18] sm:$0xff]
      %v296 = vld [vmem:[%s273 + $0x20] sm:$0xff]
      %v297 = vld [vmem:[%s273 + $0x28] sm:$0xff]
      %v298 = vld [vmem:[%s273 + $0x30] sm:$0xff]
      %v299 = vld [vmem:[%s273 + $0x38] sm:$0xff]
      %v300 = vpack.c.bf16 %v294, %v292
      %v301 = vpack.c.bf16 %v295, %v293
      %v302 = vpack.c.bf16 %v298, %v296
      %v303 = vpack.c.bf16 %v299, %v297
      %v316 = vunpack.c.l.b16 %v280
      %v317 = vunpack.c.l.b16 %v281
      %v318 = vunpack.c.l.b16 %v282
      %v319 = vunpack.c.l.b16 %v283
      %v320 = vunpack.c.l.b16 %v284
      %v321 = vunpack.c.l.b16 %v285
      %v322 = vunpack.c.l.b16 %v286
      %v323 = vunpack.c.l.b16 %v287
      %v324 = vunpack.c.l.b16 %v288
      %v325 = vunpack.c.l.b16 %v289
      %v326 = vunpack.c.l.b16 %v290
      %v327 = vunpack.c.l.b16 %v291
      %v328 = vpack.c.b16 %v317, %v316
      %v329 = vpack.c.b16 %v319, %v318
      %v330 = vpack.c.b16 %v321, %v320
      %v331 = vpack.c.b16 %v323, %v322
      %v332 = vpack.c.b16 %v325, %v324
      %v333 = vpack.c.b16 %v327, %v326
      %vm334 = vcmask 261120
      %v336 = vsel %vm334, %v328, 0
      %v339 = vsel %vm334, %v329, 0
      %v342 = vsel %vm334, %v330, 0
      %v345 = vsel %vm334, %v331, 0
      %v348 = vsel %vm334, %v332, 0
      %v351 = vsel %vm334, %v333, 0
      %353 = vmatprep.subr.bf16.mxu0 %v301
      %354 = vmatpush1.bf16.msra.mxu0 %v300
      %355 = vmatprep.subr.bf16.mxu0 %v303
      %356 = vmatpush1.bf16.msra.mxu0 %v302
      %357 = vmatprep.subr.bf16.mxu0 0
      %358 = vmatpush1.bf16.msra.mxu0 0
      %359 = vmatprep.subr.bf16.mxu0 0
      %360 = vmatpush1.bf16.msra.mxu0 0
      %361 = vmatprep.subr.bf16.mxu0 0
      %362 = vmatpush1.bf16.msra.mxu0 0
      %363 = vmatprep.subr.bf16.mxu0 0
      %364 = vmatpush1.bf16.msra.mxu0 0
      %365 = vmatprep.subr.bf16.mxu0 0
      %366 = vmatpush1.bf16.msra.mxu0 0
      %367 = vmatprep.subr.bf16.mxu0 0
      %368 = vmatpush1.bf16.msra.mxu0 0
      %369 = vmatprep.subr.bf16.mxu0 0
      %370 = vmatpush1.bf16.msra.mxu0 0
      %371 = vmatprep.subr.bf16.mxu0 0
      %372 = vmatpush1.bf16.msra.mxu0 0
      %373 = vmatprep.subr.bf16.mxu0 0
      %374 = vmatpush1.bf16.msra.mxu0 0
      %375 = vmatprep.subr.bf16.mxu0 0
      %376 = vmatpush1.bf16.msra.mxu0 0
      %377 = vmatprep.subr.bf16.mxu0 0
      %378 = vmatpush1.bf16.msra.mxu0 0
      %379 = vmatprep.subr.bf16.mxu0 0
      %380 = vmatpush1.bf16.msra.mxu0 0
      %381 = vmatprep.subr.bf16.mxu0 0
      %382 = vmatpush1.bf16.msra.mxu0 0
      %383 = vmatprep.subr.bf16.mxu0 0
      %384 = vmatpush1.bf16.msra.mxu0 0
      %385 = vmatprep.mubr.bf16.mxu0 0
      %386 = vmatmul.mubr.bf16.gmra.mrb[0].mxu0 %v336
      %v387 = vpop.f32.mrb[0].mxu0
      %v388 = vadd.f32 0.0, %v387
      %v389 = vpop.f32.mrb[0].mxu0
      %v390 = vadd.f32 0.0, %v389
      %v391 = vpop.f32.mrb[0].mxu0
      %v392 = vadd.f32 0.0, %v391
      %v393 = vpop.f32.mrb[0].mxu0
      %v394 = vadd.f32 0.0, %v393
      %395 = vmatprep.mubr.bf16.mxu0 0
      %396 = vmatmul.mubr.bf16.gmra.mrb[0].mxu0 %v339
      %v397 = vpop.f32.mrb[0].mxu0
      %v398 = vadd.f32 0.0, %v397
      %v399 = vpop.f32.mrb[0].mxu0
      %v400 = vadd.f32 0.0, %v399
      %v401 = vpop.f32.mrb[0].mxu0
      %v402 = vadd.f32 0.0, %v401
      %v403 = vpop.f32.mrb[0].mxu0
      %v404 = vadd.f32 0.0, %v403
      %405 = vmatprep.mubr.bf16.mxu0 0
      %406 = vmatmul.mubr.bf16.gmra.mrb[0].mxu0 %v342
      %v407 = vpop.f32.mrb[0].mxu0
      %v408 = vadd.f32 0.0, %v407
      %v409 = vpop.f32.mrb[0].mxu0
      %v410 = vadd.f32 0.0, %v409
      %v411 = vpop.f32.mrb[0].mxu0
      %v412 = vadd.f32 0.0, %v411
      %v413 = vpop.f32.mrb[0].mxu0
      %v414 = vadd.f32 0.0, %v413
      %415 = vmatprep.mubr.bf16.mxu0 0
      %416 = vmatmul.mubr.bf16.gmra.mrb[0].mxu0 %v345
      %v417 = vpop.f32.mrb[0].mxu0
      %v418 = vadd.f32 0.0, %v417
      %v419 = vpop.f32.mrb[0].mxu0
      %v420 = vadd.f32 0.0, %v419
      %v421 = vpop.f32.mrb[0].mxu0
      %v422 = vadd.f32 0.0, %v421
      %v423 = vpop.f32.mrb[0].mxu0
      %v424 = vadd.f32 0.0, %v423
      %425 = vmatprep.mubr.bf16.mxu0 0
      %426 = vmatmul.mubr.bf16.gmra.mrb[0].mxu0 %v348
      %v427 = vpop.f32.mrb[0].mxu0
      %v428 = vadd.f32 0.0, %v427
      %v429 = vpop.f32.mrb[0].mxu0
      %v430 = vadd.f32 0.0, %v429
      %v431 = vpop.f32.mrb[0].mxu0
      %v432 = vadd.f32 0.0, %v431
      %v433 = vpop.f32.mrb[0].mxu0
      %v434 = vadd.f32 0.0, %v433
      %435 = vmatprep.mubr.bf16.mxu0 0
      %436 = vmatmul.mubr.bf16.gmra.mrb[0].mxu0 %v351
      %v437 = vpop.f32.mrb[0].mxu0
      %v438 = vadd.f32 0.0, %v437
      %v439 = vpop.f32.mrb[0].mxu0
      %v440 = vadd.f32 0.0, %v439
      %v441 = vpop.f32.mrb[0].mxu0
      %v442 = vadd.f32 0.0, %v441
      %v443 = vpop.f32.mrb[0].mxu0
      %v444 = vadd.f32 0.0, %v443
      %445 = vdwg.mxu0
      %s446 = scalar_lea.vmem %s2, 768
      %v447 = vld [vmem:[%s446] sm:$0xff]
      %v448 = vld [vmem:[%s446 + $0x8] sm:$0xff]
      %v449 = vld [vmem:[%s446 + $0x10] sm:$0xff]
      %v450 = vld [vmem:[%s446 + $0x18] sm:$0xff]
      %v451 = vld [vmem:[%s446 + $0x20] sm:$0xff]
      %v452 = vld [vmem:[%s446 + $0x28] sm:$0xff]
      %v453 = vld [vmem:[%s446 + $0x30] sm:$0xff]
      %v454 = vld [vmem:[%s446 + $0x38] sm:$0xff]
      %v455 = vld [vmem:[%s446 + $0x40] sm:$0xff]
      %v456 = vld [vmem:[%s446 + $0x48] sm:$0xff]
      %v457 = vld [vmem:[%s446 + $0x50] sm:$0xff]
      %v458 = vld [vmem:[%s446 + $0x58] sm:$0xff]
      %v459 = vld [vmem:[%s446 + $0x60] sm:$0xff]
      %v460 = vld [vmem:[%s446 + $0x68] sm:$0xff]
      %v461 = vld [vmem:[%s446 + $0x70] sm:$0xff]
      %v462 = vld [vmem:[%s446 + $0x78] sm:$0xff]
      %v463 = vld [vmem:[%s446 + $0x80] sm:$0xff]
      %v464 = vld [vmem:[%s446 + $0x88] sm:$0xff]
      %v465 = vld [vmem:[%s446 + $0x90] sm:$0xff]
      %v466 = vld [vmem:[%s446 + $0x98] sm:$0xff]
      %v467 = vld [vmem:[%s446 + $0xa0] sm:$0xff]
      %v468 = vld [vmem:[%s446 + $0xa8] sm:$0xff]
      %v469 = vld [vmem:[%s446 + $0xb0] sm:$0xff]
      %v470 = vld [vmem:[%s446 + $0xb8] sm:$0xff]
      %v471 = vmul.f32 %v447, %v388
      %v472 = vmul.f32 %v448, %v390
      %v473 = vmul.f32 %v449, %v392
      %v474 = vmul.f32 %v450, %v394
      %v475 = vmul.f32 %v451, %v398
      %v476 = vmul.f32 %v452, %v400
      %v477 = vmul.f32 %v453, %v402
      %v478 = vmul.f32 %v454, %v404
      %v479 = vmul.f32 %v455, %v408
      %v480 = vmul.f32 %v456, %v410
      %v481 = vmul.f32 %v457, %v412
      %v482 = vmul.f32 %v458, %v414
      %v483 = vmul.f32 %v459, %v418
      %v484 = vmul.f32 %v460, %v420
      %v485 = vmul.f32 %v461, %v422
      %v486 = vmul.f32 %v462, %v424
      %v487 = vmul.f32 %v463, %v428
      %v488 = vmul.f32 %v464, %v430
      %v489 = vmul.f32 %v465, %v432
      %v490 = vmul.f32 %v466, %v434
      %v491 = vmul.f32 %v467, %v438
      %v492 = vmul.f32 %v468, %v440
      %v493 = vmul.f32 %v469, %v442
      %v494 = vmul.f32 %v470, %v444
      %495 = vrot.lane.b32.xlu0 %v388, 17
      %v496 = vpop.permute.xlu0 %495
      %497 = vrot.lane.b32.xlu0 %v392, 17
      %v498 = vpop.permute.xlu0 %497
      %499 = vrot.lane.b32.xlu0 %v398, 17
      %v500 = vpop.permute.xlu0 %499
      %501 = vrot.lane.b32.xlu0 %v402, 17
      %v502 = vpop.permute.xlu0 %501
      %503 = vrot.lane.b32.xlu0 %v408, 17
      %v504 = vpop.permute.xlu0 %503
      %505 = vrot.lane.b32.xlu0 %v412, 17
      %v506 = vpop.permute.xlu0 %505
      %507 = vrot.lane.b32.xlu0 %v418, 17
      %v508 = vpop.permute.xlu0 %507
      %509 = vrot.lane.b32.xlu0 %v422, 17
      %v510 = vpop.permute.xlu0 %509
      %511 = vrot.lane.b32.xlu0 %v428, 17
      %v512 = vpop.permute.xlu0 %511
      %513 = vrot.lane.b32.xlu0 %v432, 17
      %v514 = vpop.permute.xlu0 %513
      %515 = vrot.lane.b32.xlu0 %v438, 17
      %v516 = vpop.permute.xlu0 %515
      %517 = vrot.lane.b32.xlu0 %v442, 17
      %v518 = vpop.permute.xlu0 %517
      %519 = vrot.lane.b32.xlu0 %v390, 17
      %v520 = vpop.permute.xlu0 %519
      %521 = vrot.lane.b32.xlu0 %v394, 17
      %v522 = vpop.permute.xlu0 %521
      %523 = vrot.lane.b32.xlu0 %v400, 17
      %v524 = vpop.permute.xlu0 %523
      %525 = vrot.lane.b32.xlu0 %v404, 17
      %v526 = vpop.permute.xlu0 %525
      %527 = vrot.lane.b32.xlu0 %v410, 17
      %v528 = vpop.permute.xlu0 %527
      %529 = vrot.lane.b32.xlu0 %v414, 17
      %v530 = vpop.permute.xlu0 %529
      %531 = vrot.lane.b32.xlu0 %v420, 17
      %v532 = vpop.permute.xlu0 %531
      %533 = vrot.lane.b32.xlu0 %v424, 17
      %v534 = vpop.permute.xlu0 %533
      %535 = vrot.lane.b32.xlu0 %v430, 17
      %v536 = vpop.permute.xlu0 %535
      %537 = vrot.lane.b32.xlu0 %v434, 17
      %v538 = vpop.permute.xlu0 %537
      %539 = vrot.lane.b32.xlu0 %v440, 17
      %v540 = vpop.permute.xlu0 %539
      %541 = vrot.lane.b32.xlu0 %v444, 17
      %v542 = vpop.permute.xlu0 %541
      %v543 = vlaneseq
      %v544 = vand.u32 %v543, 127
      %vm545 = vcmp.lt.s32.totalorder %v544, 17
      %v546 = vsel %vm545, %v496, %v520
      %v547 = vsel %vm545, %v498, %v522
      %v548 = vsel %vm545, %v500, %v524
      %v549 = vsel %vm545, %v502, %v526
      %v550 = vsel %vm545, %v504, %v528
      %v551 = vsel %vm545, %v506, %v530
      %v552 = vsel %vm545, %v508, %v532
      %v553 = vsel %vm545, %v510, %v534
      %v554 = vsel %vm545, %v512, %v536
      %v555 = vsel %vm545, %v514, %v538
      %v556 = vsel %vm545, %v516, %v540
      %v557 = vsel %vm545, %v518, %v542
      %v558 = vsel %vm545, %v520, %v496
      %v559 = vsel %vm545, %v522, %v498
      %v560 = vsel %vm545, %v524, %v500
      %v561 = vsel %vm545, %v526, %v502
      %v562 = vsel %vm545, %v528, %v504
      %v563 = vsel %vm545, %v530, %v506
      %v564 = vsel %vm545, %v532, %v508
      %v565 = vsel %vm545, %v534, %v510
      %v566 = vsel %vm545, %v536, %v512
      %v567 = vsel %vm545, %v538, %v514
      %v568 = vsel %vm545, %v540, %v516
      %v569 = vsel %vm545, %v542, %v518
      %v570 = vld [vmem:[%s2] sm:$0xff]
      %v571 = vld [vmem:[%s2 + $0x8] sm:$0xff]
      %v572 = vld [vmem:[%s2 + $0x10] sm:$0xff]
      %v573 = vld [vmem:[%s2 + $0x18] sm:$0xff]
      %v574 = vld [vmem:[%s2 + $0x20] sm:$0xff]
      %v575 = vld [vmem:[%s2 + $0x28] sm:$0xff]
      %v576 = vld [vmem:[%s2 + $0x30] sm:$0xff]
      %v577 = vld [vmem:[%s2 + $0x38] sm:$0xff]
      %v578 = vld [vmem:[%s2 + $0x40] sm:$0xff]
      %v579 = vld [vmem:[%s2 + $0x48] sm:$0xff]
      %v580 = vld [vmem:[%s2 + $0x50] sm:$0xff]
      %v581 = vld [vmem:[%s2 + $0x58] sm:$0xff]
      %v582 = vld [vmem:[%s2 + $0x60] sm:$0xff]
      %v583 = vld [vmem:[%s2 + $0x68] sm:$0xff]
      %v584 = vld [vmem:[%s2 + $0x70] sm:$0xff]
      %v585 = vld [vmem:[%s2 + $0x78] sm:$0xff]
      %v586 = vld [vmem:[%s2 + $0x80] sm:$0xff]
      %v587 = vld [vmem:[%s2 + $0x88] sm:$0xff]
      %v588 = vld [vmem:[%s2 + $0x90] sm:$0xff]
      %v589 = vld [vmem:[%s2 + $0x98] sm:$0xff]
      %v590 = vld [vmem:[%s2 + $0xa0] sm:$0xff]
      %v591 = vld [vmem:[%s2 + $0xa8] sm:$0xff]
      %v592 = vld [vmem:[%s2 + $0xb0] sm:$0xff]
      %v593 = vld [vmem:[%s2 + $0xb8] sm:$0xff]
      %v594 = vmul.f32 %v570, %v558
      %v595 = vmul.f32 %v571, %v546
      %v596 = vmul.f32 %v572, %v559
      %v597 = vmul.f32 %v573, %v547
      %v598 = vmul.f32 %v574, %v560
      %v599 = vmul.f32 %v575, %v548
      %v600 = vmul.f32 %v576, %v561
      %v601 = vmul.f32 %v577, %v549
      %v602 = vmul.f32 %v578, %v562
      %v603 = vmul.f32 %v579, %v550
      %v604 = vmul.f32 %v580, %v563
      %v605 = vmul.f32 %v581, %v551
      %v606 = vmul.f32 %v582, %v564
      %v607 = vmul.f32 %v583, %v552
      %v608 = vmul.f32 %v584, %v565
      %v609 = vmul.f32 %v585, %v553
      %v610 = vmul.f32 %v586, %v566
      %v611 = vmul.f32 %v587, %v554
      %v612 = vmul.f32 %v588, %v567
      %v613 = vmul.f32 %v589, %v555
      %v614 = vmul.f32 %v590, %v568
      %v615 = vmul.f32 %v591, %v556
      %v616 = vmul.f32 %v592, %v569
      %v617 = vmul.f32 %v593, %v557
      %v618 = vadd.f32 %v471, %v594
      %v619 = vadd.f32 %v472, %v595
      %v620 = vadd.f32 %v473, %v596
      %v621 = vadd.f32 %v474, %v597
      %v622 = vadd.f32 %v475, %v598
      %v623 = vadd.f32 %v476, %v599
      %v624 = vadd.f32 %v477, %v600
      %v625 = vadd.f32 %v478, %v601
      %v626 = vadd.f32 %v479, %v602
      %v627 = vadd.f32 %v480, %v603
      %v628 = vadd.f32 %v481, %v604
      %v629 = vadd.f32 %v482, %v605
      %v630 = vadd.f32 %v483, %v606
      %v631 = vadd.f32 %v484, %v607
      %v632 = vadd.f32 %v485, %v608
      %v633 = vadd.f32 %v486, %v609
      %v634 = vadd.f32 %v487, %v610
      %v635 = vadd.f32 %v488, %v611
      %v636 = vadd.f32 %v489, %v612
      %v637 = vadd.f32 %v490, %v613
      %v638 = vadd.f32 %v491, %v614
      %v639 = vadd.f32 %v492, %v615
      %v640 = vadd.f32 %v493, %v616
      %v641 = vadd.f32 %v494, %v617
      %642 = vrot.lane.b32.xlu0 %v388, 16
      %v643 = vpop.permute.xlu0 %642
      %644 = vrot.lane.b32.xlu0 %v392, 16
      %v645 = vpop.permute.xlu0 %644
      %646 = vrot.lane.b32.xlu0 %v398, 16
      %v647 = vpop.permute.xlu0 %646
      %648 = vrot.lane.b32.xlu0 %v402, 16
      %v649 = vpop.permute.xlu0 %648
      %650 = vrot.lane.b32.xlu0 %v408, 16
      %v651 = vpop.permute.xlu0 %650
      %652 = vrot.lane.b32.xlu0 %v412, 16
      %v653 = vpop.permute.xlu0 %652
      %654 = vrot.lane.b32.xlu0 %v418, 16
      %v655 = vpop.permute.xlu0 %654
      %656 = vrot.lane.b32.xlu0 %v422, 16
      %v657 = vpop.permute.xlu0 %656
      %658 = vrot.lane.b32.xlu0 %v428, 16
      %v659 = vpop.permute.xlu0 %658
      %660 = vrot.lane.b32.xlu0 %v432, 16
      %v661 = vpop.permute.xlu0 %660
      %662 = vrot.lane.b32.xlu0 %v438, 16
      %v663 = vpop.permute.xlu0 %662
      %664 = vrot.lane.b32.xlu0 %v442, 16
      %v665 = vpop.permute.xlu0 %664
      %666 = vrot.lane.b32.xlu0 %v390, 16
      %v667 = vpop.permute.xlu0 %666
      %668 = vrot.lane.b32.xlu0 %v394, 16
      %v669 = vpop.permute.xlu0 %668
      %670 = vrot.lane.b32.xlu0 %v400, 16
      %v671 = vpop.permute.xlu0 %670
      %672 = vrot.lane.b32.xlu0 %v404, 16
      %v673 = vpop.permute.xlu0 %672
      %674 = vrot.lane.b32.xlu0 %v410, 16
      %v675 = vpop.permute.xlu0 %674
      %676 = vrot.lane.b32.xlu0 %v414, 16
      %v677 = vpop.permute.xlu0 %676
      %678 = vrot.lane.b32.xlu0 %v420, 16
      %v679 = vpop.permute.xlu0 %678
      %680 = vrot.lane.b32.xlu0 %v424, 16
      %v681 = vpop.permute.xlu0 %680
      %682 = vrot.lane.b32.xlu0 %v430, 16
      %v683 = vpop.permute.xlu0 %682
      %684 = vrot.lane.b32.xlu0 %v434, 16
      %v685 = vpop.permute.xlu0 %684
      %686 = vrot.lane.b32.xlu0 %v440, 16
      %v687 = vpop.permute.xlu0 %686
      %688 = vrot.lane.b32.xlu0 %v444, 16
      %v689 = vpop.permute.xlu0 %688
      %vm690 = vcmp.lt.s32.totalorder %v544, 16
      %v691 = vsel %vm690, %v643, %v667
      %v692 = vsel %vm690, %v645, %v669
      %v693 = vsel %vm690, %v647, %v671
      %v694 = vsel %vm690, %v649, %v673
      %v695 = vsel %vm690, %v651, %v675
      %v696 = vsel %vm690, %v653, %v677
      %v697 = vsel %vm690, %v655, %v679
      %v698 = vsel %vm690, %v657, %v681
      %v699 = vsel %vm690, %v659, %v683
      %v700 = vsel %vm690, %v661, %v685
      %v701 = vsel %vm690, %v663, %v687
      %v702 = vsel %vm690, %v665, %v689
      %v703 = vsel %vm690, %v667, %v643
      %v704 = vsel %vm690, %v669, %v645
      %v705 = vsel %vm690, %v671, %v647
      %v706 = vsel %vm690, %v673, %v649
      %v707 = vsel %vm690, %v675, %v651
      %v708 = vsel %vm690, %v677, %v653
      %v709 = vsel %vm690, %v679, %v655
      %v710 = vsel %vm690, %v681, %v657
      %v711 = vsel %vm690, %v683, %v659
      %v712 = vsel %vm690, %v685, %v661
      %v713 = vsel %vm690, %v687, %v663
      %v714 = vsel %vm690, %v689, %v665
      %s715 = scalar_lea.vmem %s2, 192
      %v716 = vld [vmem:[%s715] sm:$0xff]
      %v717 = vld [vmem:[%s715 + $0x8] sm:$0xff]
      %v718 = vld [vmem:[%s715 + $0x10] sm:$0xff]
      %v719 = vld [vmem:[%s715 + $0x18] sm:$0xff]
      %v720 = vld [vmem:[%s715 + $0x20] sm:$0xff]
      %v721 = vld [vmem:[%s715 + $0x28] sm:$0xff]
      %v722 = vld [vmem:[%s715 + $0x30] sm:$0xff]
      %v723 = vld [vmem:[%s715 + $0x38] sm:$0xff]
      %v724 = vld [vmem:[%s715 + $0x40] sm:$0xff]
      %v725 = vld [vmem:[%s715 + $0x48] sm:$0xff]
      %v726 = vld [vmem:[%s715 + $0x50] sm:$0xff]
      %v727 = vld [vmem:[%s715 + $0x58] sm:$0xff]
      %v728 = vld [vmem:[%s715 + $0x60] sm:$0xff]
      %v729 = vld [vmem:[%s715 + $0x68] sm:$0xff]
      %v730 = vld [vmem:[%s715 + $0x70] sm:$0xff]
      %v731 = vld [vmem:[%s715 + $0x78] sm:$0xff]
      %v732 = vld [vmem:[%s715 + $0x80] sm:$0xff]
      %v733 = vld [vmem:[%s715 + $0x88] sm:$0xff]
      %v734 = vld [vmem:[%s715 + $0x90] sm:$0xff]
      %v735 = vld [vmem:[%s715 + $0x98] sm:$0xff]
      %v736 = vld [vmem:[%s715 + $0xa0] sm:$0xff]
      %v737 = vld [vmem:[%s715 + $0xa8] sm:$0xff]
      %v738 = vld [vmem:[%s715 + $0xb0] sm:$0xff]
      %v739 = vld [vmem:[%s715 + $0xb8] sm:$0xff]
      %v740 = vmul.f32 %v716, %v703
      %v741 = vmul.f32 %v717, %v691
      %v742 = vmul.f32 %v718, %v704
      %v743 = vmul.f32 %v719, %v692
      %v744 = vmul.f32 %v720, %v705
      %v745 = vmul.f32 %v721, %v693
      %v746 = vmul.f32 %v722, %v706
      %v747 = vmul.f32 %v723, %v694
      %v748 = vmul.f32 %v724, %v707
      %v749 = vmul.f32 %v725, %v695
      %v750 = vmul.f32 %v726, %v708
      %v751 = vmul.f32 %v727, %v696
      %v752 = vmul.f32 %v728, %v709
      %v753 = vmul.f32 %v729, %v697
      %v754 = vmul.f32 %v730, %v710
      %v755 = vmul.f32 %v731, %v698
      %v756 = vmul.f32 %v732, %v711
      %v757 = vmul.f32 %v733, %v699
      %v758 = vmul.f32 %v734, %v712
      %v759 = vmul.f32 %v735, %v700
      %v760 = vmul.f32 %v736, %v713
      %v761 = vmul.f32 %v737, %v701
      %v762 = vmul.f32 %v738, %v714
      %v763 = vmul.f32 %v739, %v702
      %v764 = vadd.f32 %v618, %v740
      %v765 = vadd.f32 %v619, %v741
      %v766 = vadd.f32 %v620, %v742
      %v767 = vadd.f32 %v621, %v743
      %v768 = vadd.f32 %v622, %v744
      %v769 = vadd.f32 %v623, %v745
      %v770 = vadd.f32 %v624, %v746
      %v771 = vadd.f32 %v625, %v747
      %v772 = vadd.f32 %v626, %v748
      %v773 = vadd.f32 %v627, %v749
      %v774 = vadd.f32 %v628, %v750
      %v775 = vadd.f32 %v629, %v751
      %v776 = vadd.f32 %v630, %v752
      %v777 = vadd.f32 %v631, %v753
      %v778 = vadd.f32 %v632, %v754
      %v779 = vadd.f32 %v633, %v755
      %v780 = vadd.f32 %v634, %v756
      %v781 = vadd.f32 %v635, %v757
      %v782 = vadd.f32 %v636, %v758
      %v783 = vadd.f32 %v637, %v759
      %v784 = vadd.f32 %v638, %v760
      %v785 = vadd.f32 %v639, %v761
      %v786 = vadd.f32 %v640, %v762
      %v787 = vadd.f32 %v641, %v763
      %788 = vrot.lane.b32.xlu0 %v388, 15
      %v789 = vpop.permute.xlu0 %788
      %790 = vrot.lane.b32.xlu0 %v392, 15
      %v791 = vpop.permute.xlu0 %790
      %792 = vrot.lane.b32.xlu0 %v398, 15
      %v793 = vpop.permute.xlu0 %792
      %794 = vrot.lane.b32.xlu0 %v402, 15
      %v795 = vpop.permute.xlu0 %794
      %796 = vrot.lane.b32.xlu0 %v408, 15
      %v797 = vpop.permute.xlu0 %796
      %798 = vrot.lane.b32.xlu0 %v412, 15
      %v799 = vpop.permute.xlu0 %798
      %800 = vrot.lane.b32.xlu0 %v418, 15
      %v801 = vpop.permute.xlu0 %800
      %802 = vrot.lane.b32.xlu0 %v422, 15
      %v803 = vpop.permute.xlu0 %802
      %804 = vrot.lane.b32.xlu0 %v428, 15
      %v805 = vpop.permute.xlu0 %804
      %806 = vrot.lane.b32.xlu0 %v432, 15
      %v807 = vpop.permute.xlu0 %806
      %808 = vrot.lane.b32.xlu0 %v438, 15
      %v809 = vpop.permute.xlu0 %808
      %810 = vrot.lane.b32.xlu0 %v442, 15
      %v811 = vpop.permute.xlu0 %810
      %812 = vrot.lane.b32.xlu0 %v390, 15
      %v813 = vpop.permute.xlu0 %812
      %814 = vrot.lane.b32.xlu0 %v394, 15
      %v815 = vpop.permute.xlu0 %814
      %816 = vrot.lane.b32.xlu0 %v400, 15
      %v817 = vpop.permute.xlu0 %816
      %818 = vrot.lane.b32.xlu0 %v404, 15
      %v819 = vpop.permute.xlu0 %818
      %820 = vrot.lane.b32.xlu0 %v410, 15
      %v821 = vpop.permute.xlu0 %820
      %822 = vrot.lane.b32.xlu0 %v414, 15
      %v823 = vpop.permute.xlu0 %822
      %824 = vrot.lane.b32.xlu0 %v420, 15
      %v825 = vpop.permute.xlu0 %824
      %826 = vrot.lane.b32.xlu0 %v424, 15
      %v827 = vpop.permute.xlu0 %826
      %828 = vrot.lane.b32.xlu0 %v430, 15
      %v829 = vpop.permute.xlu0 %828
      %830 = vrot.lane.b32.xlu0 %v434, 15
      %v831 = vpop.permute.xlu0 %830
      %832 = vrot.lane.b32.xlu0 %v440, 15
      %v833 = vpop.permute.xlu0 %832
      %834 = vrot.lane.b32.xlu0 %v444, 15
      %v835 = vpop.permute.xlu0 %834
      %vm836 = vcmp.lt.s32.totalorder %v544, 15
      %v837 = vsel %vm836, %v789, %v813
      %v838 = vsel %vm836, %v791, %v815
      %v839 = vsel %vm836, %v793, %v817
      %v840 = vsel %vm836, %v795, %v819
      %v841 = vsel %vm836, %v797, %v821
      %v842 = vsel %vm836, %v799, %v823
      %v843 = vsel %vm836, %v801, %v825
      %v844 = vsel %vm836, %v803, %v827
      %v845 = vsel %vm836, %v805, %v829
      %v846 = vsel %vm836, %v807, %v831
      %v847 = vsel %vm836, %v809, %v833
      %v848 = vsel %vm836, %v811, %v835
      %v849 = vsel %vm836, %v813, %v789
      %v850 = vsel %vm836, %v815, %v791
      %v851 = vsel %vm836, %v817, %v793
      %v852 = vsel %vm836, %v819, %v795
      %v853 = vsel %vm836, %v821, %v797
      %v854 = vsel %vm836, %v823, %v799
      %v855 = vsel %vm836, %v825, %v801
      %v856 = vsel %vm836, %v827, %v803
      %v857 = vsel %vm836, %v829, %v805
      %v858 = vsel %vm836, %v831, %v807
      %v859 = vsel %vm836, %v833, %v809
      %v860 = vsel %vm836, %v835, %v811
      %s861 = scalar_lea.vmem %s2, 384
      %v862 = vld [vmem:[%s861] sm:$0xff]
      %v863 = vld [vmem:[%s861 + $0x8] sm:$0xff]
      %v864 = vld [vmem:[%s861 + $0x10] sm:$0xff]
      %v865 = vld [vmem:[%s861 + $0x18] sm:$0xff]
      %v866 = vld [vmem:[%s861 + $0x20] sm:$0xff]
      %v867 = vld [vmem:[%s861 + $0x28] sm:$0xff]
      %v868 = vld [vmem:[%s861 + $0x30] sm:$0xff]
      %v869 = vld [vmem:[%s861 + $0x38] sm:$0xff]
      %v870 = vld [vmem:[%s861 + $0x40] sm:$0xff]
      %v871 = vld [vmem:[%s861 + $0x48] sm:$0xff]
      %v872 = vld [vmem:[%s861 + $0x50] sm:$0xff]
      %v873 = vld [vmem:[%s861 + $0x58] sm:$0xff]
      %v874 = vld [vmem:[%s861 + $0x60] sm:$0xff]
      %v875 = vld [vmem:[%s861 + $0x68] sm:$0xff]
      %v876 = vld [vmem:[%s861 + $0x70] sm:$0xff]
      %v877 = vld [vmem:[%s861 + $0x78] sm:$0xff]
      %v878 = vld [vmem:[%s861 + $0x80] sm:$0xff]
      %v879 = vld [vmem:[%s861 + $0x88] sm:$0xff]
      %v880 = vld [vmem:[%s861 + $0x90] sm:$0xff]
      %v881 = vld [vmem:[%s861 + $0x98] sm:$0xff]
      %v882 = vld [vmem:[%s861 + $0xa0] sm:$0xff]
      %v883 = vld [vmem:[%s861 + $0xa8] sm:$0xff]
      %v884 = vld [vmem:[%s861 + $0xb0] sm:$0xff]
      %v885 = vld [vmem:[%s861 + $0xb8] sm:$0xff]
      %v886 = vmul.f32 %v862, %v849
      %v887 = vmul.f32 %v863, %v837
      %v888 = vmul.f32 %v864, %v850
      %v889 = vmul.f32 %v865, %v838
      %v890 = vmul.f32 %v866, %v851
      %v891 = vmul.f32 %v867, %v839
      %v892 = vmul.f32 %v868, %v852
      %v893 = vmul.f32 %v869, %v840
      %v894 = vmul.f32 %v870, %v853
      %v895 = vmul.f32 %v871, %v841
      %v896 = vmul.f32 %v872, %v854
      %v897 = vmul.f32 %v873, %v842
      %v898 = vmul.f32 %v874, %v855
      %v899 = vmul.f32 %v875, %v843
      %v900 = vmul.f32 %v876, %v856
      %v901 = vmul.f32 %v877, %v844
      %v902 = vmul.f32 %v878, %v857
      %v903 = vmul.f32 %v879, %v845
      %v904 = vmul.f32 %v880, %v858
      %v905 = vmul.f32 %v881, %v846
      %v906 = vmul.f32 %v882, %v859
      %v907 = vmul.f32 %v883, %v847
      %v908 = vmul.f32 %v884, %v860
      %v909 = vmul.f32 %v885, %v848
      %v910 = vadd.f32 %v764, %v886
      %v911 = vadd.f32 %v765, %v887
      %v912 = vadd.f32 %v766, %v888
      %v913 = vadd.f32 %v767, %v889
      %v914 = vadd.f32 %v768, %v890
      %v915 = vadd.f32 %v769, %v891
      %v916 = vadd.f32 %v770, %v892
      %v917 = vadd.f32 %v771, %v893
      %v918 = vadd.f32 %v772, %v894
      %v919 = vadd.f32 %v773, %v895
      %v920 = vadd.f32 %v774, %v896
      %v921 = vadd.f32 %v775, %v897
      %v922 = vadd.f32 %v776, %v898
      %v923 = vadd.f32 %v777, %v899
      %v924 = vadd.f32 %v778, %v900
      %v925 = vadd.f32 %v779, %v901
      %v926 = vadd.f32 %v780, %v902
      %v927 = vadd.f32 %v781, %v903
      %v928 = vadd.f32 %v782, %v904
      %v929 = vadd.f32 %v783, %v905
      %v930 = vadd.f32 %v784, %v906
      %v931 = vadd.f32 %v785, %v907
      %v932 = vadd.f32 %v786, %v908
      %v933 = vadd.f32 %v787, %v909
      %934 = vrot.lane.b32.xlu0 %v388, 1
      %v935 = vpop.permute.xlu0 %934
      %936 = vrot.lane.b32.xlu0 %v392, 1
      %v937 = vpop.permute.xlu0 %936
      %938 = vrot.lane.b32.xlu0 %v398, 1
      %v939 = vpop.permute.xlu0 %938
      %940 = vrot.lane.b32.xlu0 %v402, 1
      %v941 = vpop.permute.xlu0 %940
      %942 = vrot.lane.b32.xlu0 %v408, 1
      %v943 = vpop.permute.xlu0 %942
      %944 = vrot.lane.b32.xlu0 %v412, 1
      %v945 = vpop.permute.xlu0 %944
      %946 = vrot.lane.b32.xlu0 %v418, 1
      %v947 = vpop.permute.xlu0 %946
      %948 = vrot.lane.b32.xlu0 %v422, 1
      %v949 = vpop.permute.xlu0 %948
      %950 = vrot.lane.b32.xlu0 %v428, 1
      %v951 = vpop.permute.xlu0 %950
      %952 = vrot.lane.b32.xlu0 %v432, 1
      %v953 = vpop.permute.xlu0 %952
      %954 = vrot.lane.b32.xlu0 %v438, 1
      %v955 = vpop.permute.xlu0 %954
      %956 = vrot.lane.b32.xlu0 %v442, 1
      %v957 = vpop.permute.xlu0 %956
      %958 = vrot.lane.b32.xlu0 %v390, 1
      %v959 = vpop.permute.xlu0 %958
      %960 = vrot.lane.b32.xlu0 %v394, 1
      %v961 = vpop.permute.xlu0 %960
      %962 = vrot.lane.b32.xlu0 %v400, 1
      %v963 = vpop.permute.xlu0 %962
      %964 = vrot.lane.b32.xlu0 %v404, 1
      %v965 = vpop.permute.xlu0 %964
      %966 = vrot.lane.b32.xlu0 %v410, 1
      %v967 = vpop.permute.xlu0 %966
      %968 = vrot.lane.b32.xlu0 %v414, 1
      %v969 = vpop.permute.xlu0 %968
      %970 = vrot.lane.b32.xlu0 %v420, 1
      %v971 = vpop.permute.xlu0 %970
      %972 = vrot.lane.b32.xlu0 %v424, 1
      %v973 = vpop.permute.xlu0 %972
      %974 = vrot.lane.b32.xlu0 %v430, 1
      %v975 = vpop.permute.xlu0 %974
      %976 = vrot.lane.b32.xlu0 %v434, 1
      %v977 = vpop.permute.xlu0 %976
      %978 = vrot.lane.b32.xlu0 %v440, 1
      %v979 = vpop.permute.xlu0 %978
      %980 = vrot.lane.b32.xlu0 %v444, 1
      %v981 = vpop.permute.xlu0 %980
      %vm982 = vcmp.lt.s32.totalorder %v544, 1
      %v983 = vsel %vm982, %v935, %v959
      %v984 = vsel %vm982, %v937, %v961
      %v985 = vsel %vm982, %v939, %v963
      %v986 = vsel %vm982, %v941, %v965
      %v987 = vsel %vm982, %v943, %v967
      %v988 = vsel %vm982, %v945, %v969
      %v989 = vsel %vm982, %v947, %v971
      %v990 = vsel %vm982, %v949, %v973
      %v991 = vsel %vm982, %v951, %v975
      %v992 = vsel %vm982, %v953, %v977
      %v993 = vsel %vm982, %v955, %v979
      %v994 = vsel %vm982, %v957, %v981
      %v995 = vsel %vm982, %v959, %v935
      %v996 = vsel %vm982, %v961, %v937
      %v997 = vsel %vm982, %v963, %v939
      %v998 = vsel %vm982, %v965, %v941
      %v999 = vsel %vm982, %v967, %v943
      %v1000 = vsel %vm982, %v969, %v945
      %v1001 = vsel %vm982, %v971, %v947
      %v1002 = vsel %vm982, %v973, %v949
      %v1003 = vsel %vm982, %v975, %v951
      %v1004 = vsel %vm982, %v977, %v953
      %v1005 = vsel %vm982, %v979, %v955
      %v1006 = vsel %vm982, %v981, %v957
      %s1007 = scalar_lea.vmem %s2, 576
      %v1008 = vld [vmem:[%s1007] sm:$0xff]
      %v1009 = vld [vmem:[%s1007 + $0x8] sm:$0xff]
      %v1010 = vld [vmem:[%s1007 + $0x10] sm:$0xff]
      %v1011 = vld [vmem:[%s1007 + $0x18] sm:$0xff]
      %v1012 = vld [vmem:[%s1007 + $0x20] sm:$0xff]
      %v1013 = vld [vmem:[%s1007 + $0x28] sm:$0xff]
      %v1014 = vld [vmem:[%s1007 + $0x30] sm:$0xff]
      %v1015 = vld [vmem:[%s1007 + $0x38] sm:$0xff]
      %v1016 = vld [vmem:[%s1007 + $0x40] sm:$0xff]
      %v1017 = vld [vmem:[%s1007 + $0x48] sm:$0xff]
      %v1018 = vld [vmem:[%s1007 + $0x50] sm:$0xff]
      %v1019 = vld [vmem:[%s1007 + $0x58] sm:$0xff]
      %v1020 = vld [vmem:[%s1007 + $0x60] sm:$0xff]
      %v1021 = vld [vmem:[%s1007 + $0x68] sm:$0xff]
      %v1022 = vld [vmem:[%s1007 + $0x70] sm:$0xff]
      %v1023 = vld [vmem:[%s1007 + $0x78] sm:$0xff]
      %v1024 = vld [vmem:[%s1007 + $0x80] sm:$0xff]
      %v1025 = vld [vmem:[%s1007 + $0x88] sm:$0xff]
      %v1026 = vld [vmem:[%s1007 + $0x90] sm:$0xff]
      %v1027 = vld [vmem:[%s1007 + $0x98] sm:$0xff]
      %v1028 = vld [vmem:[%s1007 + $0xa0] sm:$0xff]
      %v1029 = vld [vmem:[%s1007 + $0xa8] sm:$0xff]
      %v1030 = vld [vmem:[%s1007 + $0xb0] sm:$0xff]
      %v1031 = vld [vmem:[%s1007 + $0xb8] sm:$0xff]
      %v1032 = vmul.f32 %v1008, %v995
      %v1033 = vmul.f32 %v1009, %v983
      %v1034 = vmul.f32 %v1010, %v996
      %v1035 = vmul.f32 %v1011, %v984
      %v1036 = vmul.f32 %v1012, %v997
      %v1037 = vmul.f32 %v1013, %v985
      %v1038 = vmul.f32 %v1014, %v998
      %v1039 = vmul.f32 %v1015, %v986
      %v1040 = vmul.f32 %v1016, %v999
      %v1041 = vmul.f32 %v1017, %v987
      %v1042 = vmul.f32 %v1018, %v1000
      %v1043 = vmul.f32 %v1019, %v988
      %v1044 = vmul.f32 %v1020, %v1001
      %v1045 = vmul.f32 %v1021, %v989
      %v1046 = vmul.f32 %v1022, %v1002
      %v1047 = vmul.f32 %v1023, %v990
      %v1048 = vmul.f32 %v1024, %v1003
      %v1049 = vmul.f32 %v1025, %v991
      %v1050 = vmul.f32 %v1026, %v1004
      %v1051 = vmul.f32 %v1027, %v992
      %v1052 = vmul.f32 %v1028, %v1005
      %v1053 = vmul.f32 %v1029, %v993
      %v1054 = vmul.f32 %v1030, %v1006
      %v1055 = vmul.f32 %v1031, %v994
      %v1056 = vadd.f32 %v910, %v1032
      %v1057 = vadd.f32 %v911, %v1033
      %v1058 = vadd.f32 %v912, %v1034
      %v1059 = vadd.f32 %v913, %v1035
      %v1060 = vadd.f32 %v914, %v1036
      %v1061 = vadd.f32 %v915, %v1037
      %v1062 = vadd.f32 %v916, %v1038
      %v1063 = vadd.f32 %v917, %v1039
      %v1064 = vadd.f32 %v918, %v1040
      %v1065 = vadd.f32 %v919, %v1041
      %v1066 = vadd.f32 %v920, %v1042
      %v1067 = vadd.f32 %v921, %v1043
      %v1068 = vadd.f32 %v922, %v1044
      %v1069 = vadd.f32 %v923, %v1045
      %v1070 = vadd.f32 %v924, %v1046
      %v1071 = vadd.f32 %v925, %v1047
      %v1072 = vadd.f32 %v926, %v1048
      %v1073 = vadd.f32 %v927, %v1049
      %v1074 = vadd.f32 %v928, %v1050
      %v1075 = vadd.f32 %v929, %v1051
      %v1076 = vadd.f32 %v930, %v1052
      %v1077 = vadd.f32 %v931, %v1053
      %v1078 = vadd.f32 %v932, %v1054
      %v1079 = vadd.f32 %v933, %v1055
      %1080 = vrot.lane.b32.xlu0 %v388, 127
      %v1081 = vpop.permute.xlu0 %1080
      %1082 = vrot.lane.b32.xlu0 %v392, 127
      %v1083 = vpop.permute.xlu0 %1082
      %1084 = vrot.lane.b32.xlu0 %v398, 127
      %v1085 = vpop.permute.xlu0 %1084
      %1086 = vrot.lane.b32.xlu0 %v402, 127
      %v1087 = vpop.permute.xlu0 %1086
      %1088 = vrot.lane.b32.xlu0 %v408, 127
      %v1089 = vpop.permute.xlu0 %1088
      %1090 = vrot.lane.b32.xlu0 %v412, 127
      %v1091 = vpop.permute.xlu0 %1090
      %1092 = vrot.lane.b32.xlu0 %v418, 127
      %v1093 = vpop.permute.xlu0 %1092
      %1094 = vrot.lane.b32.xlu0 %v422, 127
      %v1095 = vpop.permute.xlu0 %1094
      %1096 = vrot.lane.b32.xlu0 %v428, 127
      %v1097 = vpop.permute.xlu0 %1096
      %1098 = vrot.lane.b32.xlu0 %v432, 127
      %v1099 = vpop.permute.xlu0 %1098
      %1100 = vrot.lane.b32.xlu0 %v438, 127
      %v1101 = vpop.permute.xlu0 %1100
      %1102 = vrot.lane.b32.xlu0 %v442, 127
      %v1103 = vpop.permute.xlu0 %1102
      %1104 = vrot.lane.b32.xlu0 %v390, 127
      %v1105 = vpop.permute.xlu0 %1104
      %1106 = vrot.lane.b32.xlu0 %v394, 127
      %v1107 = vpop.permute.xlu0 %1106
      %1108 = vrot.lane.b32.xlu0 %v400, 127
      %v1109 = vpop.permute.xlu0 %1108
      %1110 = vrot.lane.b32.xlu0 %v404, 127
      %v1111 = vpop.permute.xlu0 %1110
      %1112 = vrot.lane.b32.xlu0 %v410, 127
      %v1113 = vpop.permute.xlu0 %1112
      %1114 = vrot.lane.b32.xlu0 %v414, 127
      %v1115 = vpop.permute.xlu0 %1114
      %1116 = vrot.lane.b32.xlu0 %v420, 127
      %v1117 = vpop.permute.xlu0 %1116
      %1118 = vrot.lane.b32.xlu0 %v424, 127
      %v1119 = vpop.permute.xlu0 %1118
      %1120 = vrot.lane.b32.xlu0 %v430, 127
      %v1121 = vpop.permute.xlu0 %1120
      %1122 = vrot.lane.b32.xlu0 %v434, 127
      %v1123 = vpop.permute.xlu0 %1122
      %1124 = vrot.lane.b32.xlu0 %v440, 127
      %v1125 = vpop.permute.xlu0 %1124
      %1126 = vrot.lane.b32.xlu0 %v444, 127
      %v1127 = vpop.permute.xlu0 %1126
      %vm1128 = vcmp.lt.s32.totalorder %v544, 127
      %v1129 = vsel %vm1128, %v1081, %v1105
      %v1130 = vsel %vm1128, %v1083, %v1107
      %v1131 = vsel %vm1128, %v1085, %v1109
      %v1132 = vsel %vm1128, %v1087, %v1111
      %v1133 = vsel %vm1128, %v1089, %v1113
      %v1134 = vsel %vm1128, %v1091, %v1115
      %v1135 = vsel %vm1128, %v1093, %v1117
      %v1136 = vsel %vm1128, %v1095, %v1119
      %v1137 = vsel %vm1128, %v1097, %v1121
      %v1138 = vsel %vm1128, %v1099, %v1123
      %v1139 = vsel %vm1128, %v1101, %v1125
      %v1140 = vsel %vm1128, %v1103, %v1127
      %v1141 = vsel %vm1128, %v1105, %v1081
      %v1142 = vsel %vm1128, %v1107, %v1083
      %v1143 = vsel %vm1128, %v1109, %v1085
      %v1144 = vsel %vm1128, %v1111, %v1087
      %v1145 = vsel %vm1128, %v1113, %v1089
      %v1146 = vsel %vm1128, %v1115, %v1091
      %v1147 = vsel %vm1128, %v1117, %v1093
      %v1148 = vsel %vm1128, %v1119, %v1095
      %v1149 = vsel %vm1128, %v1121, %v1097
      %v1150 = vsel %vm1128, %v1123, %v1099
      %v1151 = vsel %vm1128, %v1125, %v1101
      %v1152 = vsel %vm1128, %v1127, %v1103
      %s1153 = scalar_lea.vmem %s2, 960
      %v1154 = vld [vmem:[%s1153] sm:$0xff]
      %v1155 = vld [vmem:[%s1153 + $0x8] sm:$0xff]
      %v1156 = vld [vmem:[%s1153 + $0x10] sm:$0xff]
      %v1157 = vld [vmem:[%s1153 + $0x18] sm:$0xff]
      %v1158 = vld [vmem:[%s1153 + $0x20] sm:$0xff]
      %v1159 = vld [vmem:[%s1153 + $0x28] sm:$0xff]
      %v1160 = vld [vmem:[%s1153 + $0x30] sm:$0xff]
      %v1161 = vld [vmem:[%s1153 + $0x38] sm:$0xff]
      %v1162 = vld [vmem:[%s1153 + $0x40] sm:$0xff]
      %v1163 = vld [vmem:[%s1153 + $0x48] sm:$0xff]
      %v1164 = vld [vmem:[%s1153 + $0x50] sm:$0xff]
      %v1165 = vld [vmem:[%s1153 + $0x58] sm:$0xff]
      %v1166 = vld [vmem:[%s1153 + $0x60] sm:$0xff]
      %v1167 = vld [vmem:[%s1153 + $0x68] sm:$0xff]
      %v1168 = vld [vmem:[%s1153 + $0x70] sm:$0xff]
      %v1169 = vld [vmem:[%s1153 + $0x78] sm:$0xff]
      %v1170 = vld [vmem:[%s1153 + $0x80] sm:$0xff]
      %v1171 = vld [vmem:[%s1153 + $0x88] sm:$0xff]
      %v1172 = vld [vmem:[%s1153 + $0x90] sm:$0xff]
      %v1173 = vld [vmem:[%s1153 + $0x98] sm:$0xff]
      %v1174 = vld [vmem:[%s1153 + $0xa0] sm:$0xff]
      %v1175 = vld [vmem:[%s1153 + $0xa8] sm:$0xff]
      %v1176 = vld [vmem:[%s1153 + $0xb0] sm:$0xff]
      %v1177 = vld [vmem:[%s1153 + $0xb8] sm:$0xff]
      %v1178 = vmul.f32 %v1154, %v1129
      %v1179 = vmul.f32 %v1155, %v1141
      %v1180 = vmul.f32 %v1156, %v1130
      %v1181 = vmul.f32 %v1157, %v1142
      %v1182 = vmul.f32 %v1158, %v1131
      %v1183 = vmul.f32 %v1159, %v1143
      %v1184 = vmul.f32 %v1160, %v1132
      %v1185 = vmul.f32 %v1161, %v1144
      %v1186 = vmul.f32 %v1162, %v1133
      %v1187 = vmul.f32 %v1163, %v1145
      %v1188 = vmul.f32 %v1164, %v1134
      %v1189 = vmul.f32 %v1165, %v1146
      %v1190 = vmul.f32 %v1166, %v1135
      %v1191 = vmul.f32 %v1167, %v1147
      %v1192 = vmul.f32 %v1168, %v1136
      %v1193 = vmul.f32 %v1169, %v1148
      %v1194 = vmul.f32 %v1170, %v1137
      %v1195 = vmul.f32 %v1171, %v1149
      %v1196 = vmul.f32 %v1172, %v1138
      %v1197 = vmul.f32 %v1173, %v1150
      %v1198 = vmul.f32 %v1174, %v1139
      %v1199 = vmul.f32 %v1175, %v1151
      %v1200 = vmul.f32 %v1176, %v1140
      %v1201 = vmul.f32 %v1177, %v1152
      %v1202 = vadd.f32 %v1056, %v1178
      %v1203 = vadd.f32 %v1057, %v1179
      %v1204 = vadd.f32 %v1058, %v1180
      %v1205 = vadd.f32 %v1059, %v1181
      %v1206 = vadd.f32 %v1060, %v1182
      %v1207 = vadd.f32 %v1061, %v1183
      %v1208 = vadd.f32 %v1062, %v1184
      %v1209 = vadd.f32 %v1063, %v1185
      %v1210 = vadd.f32 %v1064, %v1186
      %v1211 = vadd.f32 %v1065, %v1187
      %v1212 = vadd.f32 %v1066, %v1188
      %v1213 = vadd.f32 %v1067, %v1189
      %v1214 = vadd.f32 %v1068, %v1190
      %v1215 = vadd.f32 %v1069, %v1191
      %v1216 = vadd.f32 %v1070, %v1192
      %v1217 = vadd.f32 %v1071, %v1193
      %v1218 = vadd.f32 %v1072, %v1194
      %v1219 = vadd.f32 %v1073, %v1195
      %v1220 = vadd.f32 %v1074, %v1196
      %v1221 = vadd.f32 %v1075, %v1197
      %v1222 = vadd.f32 %v1076, %v1198
      %v1223 = vadd.f32 %v1077, %v1199
      %v1224 = vadd.f32 %v1078, %v1200
      %v1225 = vadd.f32 %v1079, %v1201
      %1226 = vrot.lane.b32.xlu0 %v388, 113
      %v1227 = vpop.permute.xlu0 %1226
      %1228 = vrot.lane.b32.xlu0 %v392, 113
      %v1229 = vpop.permute.xlu0 %1228
      %1230 = vrot.lane.b32.xlu0 %v398, 113
      %v1231 = vpop.permute.xlu0 %1230
      %1232 = vrot.lane.b32.xlu0 %v402, 113
      %v1233 = vpop.permute.xlu0 %1232
      %1234 = vrot.lane.b32.xlu0 %v408, 113
      %v1235 = vpop.permute.xlu0 %1234
      %1236 = vrot.lane.b32.xlu0 %v412, 113
      %v1237 = vpop.permute.xlu0 %1236
      %1238 = vrot.lane.b32.xlu0 %v418, 113
      %v1239 = vpop.permute.xlu0 %1238
      %1240 = vrot.lane.b32.xlu0 %v422, 113
      %v1241 = vpop.permute.xlu0 %1240
      %1242 = vrot.lane.b32.xlu0 %v428, 113
      %v1243 = vpop.permute.xlu0 %1242
      %1244 = vrot.lane.b32.xlu0 %v432, 113
      %v1245 = vpop.permute.xlu0 %1244
      %1246 = vrot.lane.b32.xlu0 %v438, 113
      %v1247 = vpop.permute.xlu0 %1246
      %1248 = vrot.lane.b32.xlu0 %v442, 113
      %v1249 = vpop.permute.xlu0 %1248
      %1250 = vrot.lane.b32.xlu0 %v390, 113
      %v1251 = vpop.permute.xlu0 %1250
      %1252 = vrot.lane.b32.xlu0 %v394, 113
      %v1253 = vpop.permute.xlu0 %1252
      %1254 = vrot.lane.b32.xlu0 %v400, 113
      %v1255 = vpop.permute.xlu0 %1254
      %1256 = vrot.lane.b32.xlu0 %v404, 113
      %v1257 = vpop.permute.xlu0 %1256
      %1258 = vrot.lane.b32.xlu0 %v410, 113
      %v1259 = vpop.permute.xlu0 %1258
      %1260 = vrot.lane.b32.xlu0 %v414, 113
      %v1261 = vpop.permute.xlu0 %1260
      %1262 = vrot.lane.b32.xlu0 %v420, 113
      %v1263 = vpop.permute.xlu0 %1262
      %1264 = vrot.lane.b32.xlu0 %v424, 113
      %v1265 = vpop.permute.xlu0 %1264
      %1266 = vrot.lane.b32.xlu0 %v430, 113
      %v1267 = vpop.permute.xlu0 %1266
      %1268 = vrot.lane.b32.xlu0 %v434, 113
      %v1269 = vpop.permute.xlu0 %1268
      %1270 = vrot.lane.b32.xlu0 %v440, 113
      %v1271 = vpop.permute.xlu0 %1270
      %1272 = vrot.lane.b32.xlu0 %v444, 113
      %v1273 = vpop.permute.xlu0 %1272
      %vm1274 = vcmp.lt.s32.totalorder %v544, 113
      %v1275 = vsel %vm1274, %v1227, %v1251
      %v1276 = vsel %vm1274, %v1229, %v1253
      %v1277 = vsel %vm1274, %v1231, %v1255
      %v1278 = vsel %vm1274, %v1233, %v1257
      %v1279 = vsel %vm1274, %v1235, %v1259
      %v1280 = vsel %vm1274, %v1237, %v1261
      %v1281 = vsel %vm1274, %v1239, %v1263
      %v1282 = vsel %vm1274, %v1241, %v1265
      %v1283 = vsel %vm1274, %v1243, %v1267
      %v1284 = vsel %vm1274, %v1245, %v1269
      %v1285 = vsel %vm1274, %v1247, %v1271
      %v1286 = vsel %vm1274, %v1249, %v1273
      %v1287 = vsel %vm1274, %v1251, %v1227
      %v1288 = vsel %vm1274, %v1253, %v1229
      %v1289 = vsel %vm1274, %v1255, %v1231
      %v1290 = vsel %vm1274, %v1257, %v1233
      %v1291 = vsel %vm1274, %v1259, %v1235
      %v1292 = vsel %vm1274, %v1261, %v1237
      %v1293 = vsel %vm1274, %v1263, %v1239
      %v1294 = vsel %vm1274, %v1265, %v1241
      %v1295 = vsel %vm1274, %v1267, %v1243
      %v1296 = vsel %vm1274, %v1269, %v1245
      %v1297 = vsel %vm1274, %v1271, %v1247
      %v1298 = vsel %vm1274, %v1273, %v1249
      %s1299 = scalar_lea.vmem %s2, 1152
      %v1300 = vld [vmem:[%s1299] sm:$0xff]
      %v1301 = vld [vmem:[%s1299 + $0x8] sm:$0xff]
      %v1302 = vld [vmem:[%s1299 + $0x10] sm:$0xff]
      %v1303 = vld [vmem:[%s1299 + $0x18] sm:$0xff]
      %v1304 = vld [vmem:[%s1299 + $0x20] sm:$0xff]
      %v1305 = vld [vmem:[%s1299 + $0x28] sm:$0xff]
      %v1306 = vld [vmem:[%s1299 + $0x30] sm:$0xff]
      %v1307 = vld [vmem:[%s1299 + $0x38] sm:$0xff]
      %v1308 = vld [vmem:[%s1299 + $0x40] sm:$0xff]
      %v1309 = vld [vmem:[%s1299 + $0x48] sm:$0xff]
      %v1310 = vld [vmem:[%s1299 + $0x50] sm:$0xff]
      %v1311 = vld [vmem:[%s1299 + $0x58] sm:$0xff]
      %v1312 = vld [vmem:[%s1299 + $0x60] sm:$0xff]
      %v1313 = vld [vmem:[%s1299 + $0x68] sm:$0xff]
      %v1314 = vld [vmem:[%s1299 + $0x70] sm:$0xff]
      %v1315 = vld [vmem:[%s1299 + $0x78] sm:$0xff]
      %v1316 = vld [vmem:[%s1299 + $0x80] sm:$0xff]
      %v1317 = vld [vmem:[%s1299 + $0x88] sm:$0xff]
      %v1318 = vld [vmem:[%s1299 + $0x90] sm:$0xff]
      %v1319 = vld [vmem:[%s1299 + $0x98] sm:$0xff]
      %v1320 = vld [vmem:[%s1299 + $0xa0] sm:$0xff]
      %v1321 = vld [vmem:[%s1299 + $0xa8] sm:$0xff]
      %v1322 = vld [vmem:[%s1299 + $0xb0] sm:$0xff]
      %v1323 = vld [vmem:[%s1299 + $0xb8] sm:$0xff]
      %v1324 = vmul.f32 %v1300, %v1275
      %v1325 = vmul.f32 %v1301, %v1287
      %v1326 = vmul.f32 %v1302, %v1276
      %v1327 = vmul.f32 %v1303, %v1288
      %v1328 = vmul.f32 %v1304, %v1277
      %v1329 = vmul.f32 %v1305, %v1289
      %v1330 = vmul.f32 %v1306, %v1278
      %v1331 = vmul.f32 %v1307, %v1290
      %v1332 = vmul.f32 %v1308, %v1279
      %v1333 = vmul.f32 %v1309, %v1291
      %v1334 = vmul.f32 %v1310, %v1280
      %v1335 = vmul.f32 %v1311, %v1292
      %v1336 = vmul.f32 %v1312, %v1281
      %v1337 = vmul.f32 %v1313, %v1293
      %v1338 = vmul.f32 %v1314, %v1282
      %v1339 = vmul.f32 %v1315, %v1294
      %v1340 = vmul.f32 %v1316, %v1283
      %v1341 = vmul.f32 %v1317, %v1295
      %v1342 = vmul.f32 %v1318, %v1284
      %v1343 = vmul.f32 %v1319, %v1296
      %v1344 = vmul.f32 %v1320, %v1285
      %v1345 = vmul.f32 %v1321, %v1297
      %v1346 = vmul.f32 %v1322, %v1286
      %v1347 = vmul.f32 %v1323, %v1298
      %v1348 = vadd.f32 %v1202, %v1324
      %v1349 = vadd.f32 %v1203, %v1325
      %v1350 = vadd.f32 %v1204, %v1326
      %v1351 = vadd.f32 %v1205, %v1327
      %v1352 = vadd.f32 %v1206, %v1328
      %v1353 = vadd.f32 %v1207, %v1329
      %v1354 = vadd.f32 %v1208, %v1330
      %v1355 = vadd.f32 %v1209, %v1331
      %v1356 = vadd.f32 %v1210, %v1332
      %v1357 = vadd.f32 %v1211, %v1333
      %v1358 = vadd.f32 %v1212, %v1334
      %v1359 = vadd.f32 %v1213, %v1335
      %v1360 = vadd.f32 %v1214, %v1336
      %v1361 = vadd.f32 %v1215, %v1337
      %v1362 = vadd.f32 %v1216, %v1338
      %v1363 = vadd.f32 %v1217, %v1339
      %v1364 = vadd.f32 %v1218, %v1340
      %v1365 = vadd.f32 %v1219, %v1341
      %v1366 = vadd.f32 %v1220, %v1342
      %v1367 = vadd.f32 %v1221, %v1343
      %v1368 = vadd.f32 %v1222, %v1344
      %v1369 = vadd.f32 %v1223, %v1345
      %v1370 = vadd.f32 %v1224, %v1346
      %v1371 = vadd.f32 %v1225, %v1347
      %1372 = vrot.lane.b32.xlu0 %v388, 112
      %v1373 = vpop.permute.xlu0 %1372
      %1374 = vrot.lane.b32.xlu0 %v392, 112
      %v1375 = vpop.permute.xlu0 %1374
      %1376 = vrot.lane.b32.xlu0 %v398, 112
      %v1377 = vpop.permute.xlu0 %1376
      %1378 = vrot.lane.b32.xlu0 %v402, 112
      %v1379 = vpop.permute.xlu0 %1378
      %1380 = vrot.lane.b32.xlu0 %v408, 112
      %v1381 = vpop.permute.xlu0 %1380
      %1382 = vrot.lane.b32.xlu0 %v412, 112
      %v1383 = vpop.permute.xlu0 %1382
      %1384 = vrot.lane.b32.xlu0 %v418, 112
      %v1385 = vpop.permute.xlu0 %1384
      %1386 = vrot.lane.b32.xlu0 %v422, 112
      %v1387 = vpop.permute.xlu0 %1386
      %1388 = vrot.lane.b32.xlu0 %v428, 112
      %v1389 = vpop.permute.xlu0 %1388
      %1390 = vrot.lane.b32.xlu0 %v432, 112
      %v1391 = vpop.permute.xlu0 %1390
      %1392 = vrot.lane.b32.xlu0 %v438, 112
      %v1393 = vpop.permute.xlu0 %1392
      %1394 = vrot.lane.b32.xlu0 %v442, 112
      %v1395 = vpop.permute.xlu0 %1394
      %1396 = vrot.lane.b32.xlu0 %v390, 112
      %v1397 = vpop.permute.xlu0 %1396
      %1398 = vrot.lane.b32.xlu0 %v394, 112
      %v1399 = vpop.permute.xlu0 %1398
      %1400 = vrot.lane.b32.xlu0 %v400, 112
      %v1401 = vpop.permute.xlu0 %1400
      %1402 = vrot.lane.b32.xlu0 %v404, 112
      %v1403 = vpop.permute.xlu0 %1402
      %1404 = vrot.lane.b32.xlu0 %v410, 112
      %v1405 = vpop.permute.xlu0 %1404
      %1406 = vrot.lane.b32.xlu0 %v414, 112
      %v1407 = vpop.permute.xlu0 %1406
      %1408 = vrot.lane.b32.xlu0 %v420, 112
      %v1409 = vpop.permute.xlu0 %1408
      %1410 = vrot.lane.b32.xlu0 %v424, 112
      %v1411 = vpop.permute.xlu0 %1410
      %1412 = vrot.lane.b32.xlu0 %v430, 112
      %v1413 = vpop.permute.xlu0 %1412
      %1414 = vrot.lane.b32.xlu0 %v434, 112
      %v1415 = vpop.permute.xlu0 %1414
      %1416 = vrot.lane.b32.xlu0 %v440, 112
      %v1417 = vpop.permute.xlu0 %1416
      %1418 = vrot.lane.b32.xlu0 %v444, 112
      %v1419 = vpop.permute.xlu0 %1418
      %vm1420 = vcmp.lt.s32.totalorder %v544, 112
      %v1421 = vsel %vm1420, %v1373, %v1397
      %v1422 = vsel %vm1420, %v1375, %v1399
      %v1423 = vsel %vm1420, %v1377, %v1401
      %v1424 = vsel %vm1420, %v1379, %v1403
      %v1425 = vsel %vm1420, %v1381, %v1405
      %v1426 = vsel %vm1420, %v1383, %v1407
      %v1427 = vsel %vm1420, %v1385, %v1409
      %v1428 = vsel %vm1420, %v1387, %v1411
      %v1429 = vsel %vm1420, %v1389, %v1413
      %v1430 = vsel %vm1420, %v1391, %v1415
      %v1431 = vsel %vm1420, %v1393, %v1417
      %v1432 = vsel %vm1420, %v1395, %v1419
      %v1433 = vsel %vm1420, %v1397, %v1373
      %v1434 = vsel %vm1420, %v1399, %v1375
      %v1435 = vsel %vm1420, %v1401, %v1377
      %v1436 = vsel %vm1420, %v1403, %v1379
      %v1437 = vsel %vm1420, %v1405, %v1381
      %v1438 = vsel %vm1420, %v1407, %v1383
      %v1439 = vsel %vm1420, %v1409, %v1385
      %v1440 = vsel %vm1420, %v1411, %v1387
      %v1441 = vsel %vm1420, %v1413, %v1389
      %v1442 = vsel %vm1420, %v1415, %v1391
      %v1443 = vsel %vm1420, %v1417, %v1393
      %v1444 = vsel %vm1420, %v1419, %v1395
      %s1445 = scalar_lea.vmem %s2, 1344
      %v1446 = vld [vmem:[%s1445] sm:$0xff]
      %v1447 = vld [vmem:[%s1445 + $0x8] sm:$0xff]
      %v1448 = vld [vmem:[%s1445 + $0x10] sm:$0xff]
      %v1449 = vld [vmem:[%s1445 + $0x18] sm:$0xff]
      %v1450 = vld [vmem:[%s1445 + $0x20] sm:$0xff]
      %v1451 = vld [vmem:[%s1445 + $0x28] sm:$0xff]
      %v1452 = vld [vmem:[%s1445 + $0x30] sm:$0xff]
      %v1453 = vld [vmem:[%s1445 + $0x38] sm:$0xff]
      %v1454 = vld [vmem:[%s1445 + $0x40] sm:$0xff]
      %v1455 = vld [vmem:[%s1445 + $0x48] sm:$0xff]
      %v1456 = vld [vmem:[%s1445 + $0x50] sm:$0xff]
      %v1457 = vld [vmem:[%s1445 + $0x58] sm:$0xff]
      %v1458 = vld [vmem:[%s1445 + $0x60] sm:$0xff]
      %v1459 = vld [vmem:[%s1445 + $0x68] sm:$0xff]
      %v1460 = vld [vmem:[%s1445 + $0x70] sm:$0xff]
      %v1461 = vld [vmem:[%s1445 + $0x78] sm:$0xff]
      %v1462 = vld [vmem:[%s1445 + $0x80] sm:$0xff]
      %v1463 = vld [vmem:[%s1445 + $0x88] sm:$0xff]
      %v1464 = vld [vmem:[%s1445 + $0x90] sm:$0xff]
      %v1465 = vld [vmem:[%s1445 + $0x98] sm:$0xff]
      %v1466 = vld [vmem:[%s1445 + $0xa0] sm:$0xff]
      %v1467 = vld [vmem:[%s1445 + $0xa8] sm:$0xff]
      %v1468 = vld [vmem:[%s1445 + $0xb0] sm:$0xff]
      %v1469 = vld [vmem:[%s1445 + $0xb8] sm:$0xff]
      %v1470 = vmul.f32 %v1446, %v1421
      %v1471 = vmul.f32 %v1447, %v1433
      %v1472 = vmul.f32 %v1448, %v1422
      %v1473 = vmul.f32 %v1449, %v1434
      %v1474 = vmul.f32 %v1450, %v1423
      %v1475 = vmul.f32 %v1451, %v1435
      %v1476 = vmul.f32 %v1452, %v1424
      %v1477 = vmul.f32 %v1453, %v1436
      %v1478 = vmul.f32 %v1454, %v1425
      %v1479 = vmul.f32 %v1455, %v1437
      %v1480 = vmul.f32 %v1456, %v1426
      %v1481 = vmul.f32 %v1457, %v1438
      %v1482 = vmul.f32 %v1458, %v1427
      %v1483 = vmul.f32 %v1459, %v1439
      %v1484 = vmul.f32 %v1460, %v1428
      %v1485 = vmul.f32 %v1461, %v1440
      %v1486 = vmul.f32 %v1462, %v1429
      %v1487 = vmul.f32 %v1463, %v1441
      %v1488 = vmul.f32 %v1464, %v1430
      %v1489 = vmul.f32 %v1465, %v1442
      %v1490 = vmul.f32 %v1466, %v1431
      %v1491 = vmul.f32 %v1467, %v1443
      %v1492 = vmul.f32 %v1468, %v1432
      %v1493 = vmul.f32 %v1469, %v1444
      %v1494 = vadd.f32 %v1348, %v1470
      %v1495 = vadd.f32 %v1349, %v1471
      %v1496 = vadd.f32 %v1350, %v1472
      %v1497 = vadd.f32 %v1351, %v1473
      %v1498 = vadd.f32 %v1352, %v1474
      %v1499 = vadd.f32 %v1353, %v1475
      %v1500 = vadd.f32 %v1354, %v1476
      %v1501 = vadd.f32 %v1355, %v1477
      %v1502 = vadd.f32 %v1356, %v1478
      %v1503 = vadd.f32 %v1357, %v1479
      %v1504 = vadd.f32 %v1358, %v1480
      %v1505 = vadd.f32 %v1359, %v1481
      %v1506 = vadd.f32 %v1360, %v1482
      %v1507 = vadd.f32 %v1361, %v1483
      %v1508 = vadd.f32 %v1362, %v1484
      %v1509 = vadd.f32 %v1363, %v1485
      %v1510 = vadd.f32 %v1364, %v1486
      %v1511 = vadd.f32 %v1365, %v1487
      %v1512 = vadd.f32 %v1366, %v1488
      %v1513 = vadd.f32 %v1367, %v1489
      %v1514 = vadd.f32 %v1368, %v1490
      %v1515 = vadd.f32 %v1369, %v1491
      %v1516 = vadd.f32 %v1370, %v1492
      %v1517 = vadd.f32 %v1371, %v1493
      %1518 = vrot.lane.b32.xlu0 %v388, 111
      %v1519 = vpop.permute.xlu0 %1518
      %1520 = vrot.lane.b32.xlu0 %v392, 111
      %v1521 = vpop.permute.xlu0 %1520
      %1522 = vrot.lane.b32.xlu0 %v398, 111
      %v1523 = vpop.permute.xlu0 %1522
      %1524 = vrot.lane.b32.xlu0 %v402, 111
      %v1525 = vpop.permute.xlu0 %1524
      %1526 = vrot.lane.b32.xlu0 %v408, 111
      %v1527 = vpop.permute.xlu0 %1526
      %1528 = vrot.lane.b32.xlu0 %v412, 111
      %v1529 = vpop.permute.xlu0 %1528
      %1530 = vrot.lane.b32.xlu0 %v418, 111
      %v1531 = vpop.permute.xlu0 %1530
      %1532 = vrot.lane.b32.xlu0 %v422, 111
      %v1533 = vpop.permute.xlu0 %1532
      %1534 = vrot.lane.b32.xlu0 %v428, 111
      %v1535 = vpop.permute.xlu0 %1534
      %1536 = vrot.lane.b32.xlu0 %v432, 111
      %v1537 = vpop.permute.xlu0 %1536
      %1538 = vrot.lane.b32.xlu0 %v438, 111
      %v1539 = vpop.permute.xlu0 %1538
      %1540 = vrot.lane.b32.xlu0 %v442, 111
      %v1541 = vpop.permute.xlu0 %1540
      %1542 = vrot.lane.b32.xlu0 %v390, 111
      %v1543 = vpop.permute.xlu0 %1542
      %1544 = vrot.lane.b32.xlu0 %v394, 111
      %v1545 = vpop.permute.xlu0 %1544
      %1546 = vrot.lane.b32.xlu0 %v400, 111
      %v1547 = vpop.permute.xlu0 %1546
      %1548 = vrot.lane.b32.xlu0 %v404, 111
      %v1549 = vpop.permute.xlu0 %1548
      %1550 = vrot.lane.b32.xlu0 %v410, 111
      %v1551 = vpop.permute.xlu0 %1550
      %1552 = vrot.lane.b32.xlu0 %v414, 111
      %v1553 = vpop.permute.xlu0 %1552
      %1554 = vrot.lane.b32.xlu0 %v420, 111
      %v1555 = vpop.permute.xlu0 %1554
      %1556 = vrot.lane.b32.xlu0 %v424, 111
      %v1557 = vpop.permute.xlu0 %1556
      %1558 = vrot.lane.b32.xlu0 %v430, 111
      %v1559 = vpop.permute.xlu0 %1558
      %1560 = vrot.lane.b32.xlu0 %v434, 111
      %v1561 = vpop.permute.xlu0 %1560
      %1562 = vrot.lane.b32.xlu0 %v440, 111
      %v1563 = vpop.permute.xlu0 %1562
      %1564 = vrot.lane.b32.xlu0 %v444, 111
      %v1565 = vpop.permute.xlu0 %1564
      %vm1566 = vcmp.lt.s32.totalorder %v544, 111
      %v1567 = vsel %vm1566, %v1519, %v1543
      %v1568 = vsel %vm1566, %v1521, %v1545
      %v1569 = vsel %vm1566, %v1523, %v1547
      %v1570 = vsel %vm1566, %v1525, %v1549
      %v1571 = vsel %vm1566, %v1527, %v1551
      %v1572 = vsel %vm1566, %v1529, %v1553
      %v1573 = vsel %vm1566, %v1531, %v1555
      %v1574 = vsel %vm1566, %v1533, %v1557
      %v1575 = vsel %vm1566, %v1535, %v1559
      %v1576 = vsel %vm1566, %v1537, %v1561
      %v1577 = vsel %vm1566, %v1539, %v1563
      %v1578 = vsel %vm1566, %v1541, %v1565
      %v1579 = vsel %vm1566, %v1543, %v1519
      %v1580 = vsel %vm1566, %v1545, %v1521
      %v1581 = vsel %vm1566, %v1547, %v1523
      %v1582 = vsel %vm1566, %v1549, %v1525
      %v1583 = vsel %vm1566, %v1551, %v1527
      %v1584 = vsel %vm1566, %v1553, %v1529
      %v1585 = vsel %vm1566, %v1555, %v1531
      %v1586 = vsel %vm1566, %v1557, %v1533
      %v1587 = vsel %vm1566, %v1559, %v1535
      %v1588 = vsel %vm1566, %v1561, %v1537
      %v1589 = vsel %vm1566, %v1563, %v1539
      %v1590 = vsel %vm1566, %v1565, %v1541
      %s1591 = scalar_lea.vmem %s2, 1536
      %v1592 = vld [vmem:[%s1591] sm:$0xff]
      %v1593 = vld [vmem:[%s1591 + $0x8] sm:$0xff]
      %v1594 = vld [vmem:[%s1591 + $0x10] sm:$0xff]
      %v1595 = vld [vmem:[%s1591 + $0x18] sm:$0xff]
      %v1596 = vld [vmem:[%s1591 + $0x20] sm:$0xff]
      %v1597 = vld [vmem:[%s1591 + $0x28] sm:$0xff]
      %v1598 = vld [vmem:[%s1591 + $0x30] sm:$0xff]
      %v1599 = vld [vmem:[%s1591 + $0x38] sm:$0xff]
      %v1600 = vld [vmem:[%s1591 + $0x40] sm:$0xff]
      %v1601 = vld [vmem:[%s1591 + $0x48] sm:$0xff]
      %v1602 = vld [vmem:[%s1591 + $0x50] sm:$0xff]
      %v1603 = vld [vmem:[%s1591 + $0x58] sm:$0xff]
      %v1604 = vld [vmem:[%s1591 + $0x60] sm:$0xff]
      %v1605 = vld [vmem:[%s1591 + $0x68] sm:$0xff]
      %v1606 = vld [vmem:[%s1591 + $0x70] sm:$0xff]
      %v1607 = vld [vmem:[%s1591 + $0x78] sm:$0xff]
      %v1608 = vld [vmem:[%s1591 + $0x80] sm:$0xff]
      %v1609 = vld [vmem:[%s1591 + $0x88] sm:$0xff]
      %v1610 = vld [vmem:[%s1591 + $0x90] sm:$0xff]
      %v1611 = vld [vmem:[%s1591 + $0x98] sm:$0xff]
      %v1612 = vld [vmem:[%s1591 + $0xa0] sm:$0xff]
      %v1613 = vld [vmem:[%s1591 + $0xa8] sm:$0xff]
      %v1614 = vld [vmem:[%s1591 + $0xb0] sm:$0xff]
      %v1615 = vld [vmem:[%s1591 + $0xb8] sm:$0xff]
      %v1616 = vmul.f32 %v1592, %v1567
      %v1617 = vmul.f32 %v1593, %v1579
      %v1618 = vmul.f32 %v1594, %v1568
      %v1619 = vmul.f32 %v1595, %v1580
      %v1620 = vmul.f32 %v1596, %v1569
      %v1621 = vmul.f32 %v1597, %v1581
      %v1622 = vmul.f32 %v1598, %v1570
      %v1623 = vmul.f32 %v1599, %v1582
      %v1624 = vmul.f32 %v1600, %v1571
      %v1625 = vmul.f32 %v1601, %v1583
      %v1626 = vmul.f32 %v1602, %v1572
      %v1627 = vmul.f32 %v1603, %v1584
      %v1628 = vmul.f32 %v1604, %v1573
      %v1629 = vmul.f32 %v1605, %v1585
      %v1630 = vmul.f32 %v1606, %v1574
      %v1631 = vmul.f32 %v1607, %v1586
      %v1632 = vmul.f32 %v1608, %v1575
      %v1633 = vmul.f32 %v1609, %v1587
      %v1634 = vmul.f32 %v1610, %v1576
      %v1635 = vmul.f32 %v1611, %v1588
      %v1636 = vmul.f32 %v1612, %v1577
      %v1637 = vmul.f32 %v1613, %v1589
      %v1638 = vmul.f32 %v1614, %v1578
      %v1639 = vmul.f32 %v1615, %v1590
      %v1640 = vadd.f32 %v1494, %v1616
      %v1641 = vadd.f32 %v1495, %v1617
      %v1642 = vadd.f32 %v1496, %v1618
      %v1643 = vadd.f32 %v1497, %v1619
      %v1644 = vadd.f32 %v1498, %v1620
      %v1645 = vadd.f32 %v1499, %v1621
      %v1646 = vadd.f32 %v1500, %v1622
      %v1647 = vadd.f32 %v1501, %v1623
      %v1648 = vadd.f32 %v1502, %v1624
      %v1649 = vadd.f32 %v1503, %v1625
      %v1650 = vadd.f32 %v1504, %v1626
      %v1651 = vadd.f32 %v1505, %v1627
      %v1652 = vadd.f32 %v1506, %v1628
      %v1653 = vadd.f32 %v1507, %v1629
      %v1654 = vadd.f32 %v1508, %v1630
      %v1655 = vadd.f32 %v1509, %v1631
      %v1656 = vadd.f32 %v1510, %v1632
      %v1657 = vadd.f32 %v1511, %v1633
      %v1658 = vadd.f32 %v1512, %v1634
      %v1659 = vadd.f32 %v1513, %v1635
      %v1660 = vadd.f32 %v1514, %v1636
      %v1661 = vadd.f32 %v1515, %v1637
      %v1662 = vadd.f32 %v1516, %v1638
      %v1663 = vadd.f32 %v1517, %v1639
      %v1664 = vmul.f32 %v1640, %v1640
      %v1665 = vmul.f32 %v1641, %v1641
      %v1666 = vmul.f32 %v1642, %v1642
      %v1667 = vmul.f32 %v1643, %v1643
      %v1668 = vmul.f32 %v1644, %v1644
      %v1669 = vmul.f32 %v1645, %v1645
      %v1670 = vmul.f32 %v1646, %v1646
      %v1671 = vmul.f32 %v1647, %v1647
      %v1672 = vadd.f32 %v1664, %v1665
      %1673 = vadd.xlane.f32.xlu0 %v1672
      %v1674 = vpop.xlane.xlu0 %1673
      %v1675 = vadd.f32 %v1666, %v1667
      %1676 = vadd.xlane.f32.xlu0 %v1675
      %v1677 = vpop.xlane.xlu0 %1676
      %v1678 = vadd.f32 %v1668, %v1669
      %1679 = vadd.xlane.f32.xlu0 %v1678
      %v1680 = vpop.xlane.xlu0 %1679
      %v1681 = vadd.f32 %v1670, %v1671
      %1682 = vadd.xlane.f32.xlu0 %v1681
      %v1683 = vpop.xlane.xlu0 %1682
      %v1684 = vmax.f32 %v1674, 1e-24
      %v1685 = vmax.f32 %v1677, 1e-24
      %v1686 = vmax.f32 %v1680, 1e-24
      %v1687 = vmax.f32 %v1683, 1e-24
      %v1688 = vrsqrt.pop %v1684
      %v1689 = vrsqrt.pop %v1685
      %v1690 = vrsqrt.pop %v1686
      %v1691 = vrsqrt.pop %v1687
      %v1692 = vmul.f32 %v1640, %v1688
      %v1693 = vmul.f32 %v1641, %v1688
      %v1694 = vmul.f32 %v1642, %v1689
      %v1695 = vmul.f32 %v1643, %v1689
      %v1696 = vmul.f32 %v1644, %v1690
      %v1697 = vmul.f32 %v1645, %v1690
      %v1698 = vmul.f32 %v1646, %v1691
      %v1699 = vmul.f32 %v1647, %v1691
      %v1700 = vmul.f32 %v1648, %v1648
      %v1701 = vmul.f32 %v1649, %v1649
      %v1702 = vmul.f32 %v1650, %v1650
      %v1703 = vmul.f32 %v1651, %v1651
      %v1704 = vmul.f32 %v1652, %v1652
      %v1705 = vmul.f32 %v1653, %v1653
      %v1706 = vmul.f32 %v1654, %v1654
      %v1707 = vmul.f32 %v1655, %v1655
      %v1708 = vadd.f32 %v1700, %v1701
      %1709 = vadd.xlane.f32.xlu0 %v1708
      %v1710 = vpop.xlane.xlu0 %1709
      %v1711 = vadd.f32 %v1702, %v1703
      %1712 = vadd.xlane.f32.xlu0 %v1711
      %v1713 = vpop.xlane.xlu0 %1712
      %v1714 = vadd.f32 %v1704, %v1705
      %1715 = vadd.xlane.f32.xlu0 %v1714
      %v1716 = vpop.xlane.xlu0 %1715
      %v1717 = vadd.f32 %v1706, %v1707
      %1718 = vadd.xlane.f32.xlu0 %v1717
      %v1719 = vpop.xlane.xlu0 %1718
      %v1720 = vmax.f32 %v1710, 1e-24
      %v1721 = vmax.f32 %v1713, 1e-24
      %v1722 = vmax.f32 %v1716, 1e-24
      %v1723 = vmax.f32 %v1719, 1e-24
      %v1724 = vrsqrt.pop %v1720
      %v1725 = vrsqrt.pop %v1721
      %v1726 = vrsqrt.pop %v1722
      %v1727 = vrsqrt.pop %v1723
      %v1728 = vmul.f32 %v1648, %v1724
      %v1729 = vmul.f32 %v1649, %v1724
      %v1730 = vmul.f32 %v1650, %v1725
      %v1731 = vmul.f32 %v1651, %v1725
      %v1732 = vmul.f32 %v1652, %v1726
      %v1733 = vmul.f32 %v1653, %v1726
      %v1734 = vmul.f32 %v1654, %v1727
      %v1735 = vmul.f32 %v1655, %v1727
      %v1736 = vpack.c.bf16 %v1694, %v1692
      %v1737 = vpack.c.bf16 %v1695, %v1693
      %v1738 = vpack.c.bf16 %v1698, %v1696
      %v1739 = vpack.c.bf16 %v1699, %v1697
      %v1740 = vpack.c.bf16 %v1730, %v1728
      %v1741 = vpack.c.bf16 %v1731, %v1729
      %v1742 = vpack.c.bf16 %v1734, %v1732
      %v1743 = vpack.c.bf16 %v1735, %v1733
      %1744 = vmatprep.subr.bf16.mxu0 %v1741
      %1745 = vmatpush1.bf16.xpose.msra.mxu0 %v1740
      %1746 = vmatprep.subr.bf16.mxu0 %v1743
      %1747 = vmatpush1.bf16.xpose.msra.mxu0 %v1742
      %1748 = vmatprep.subr.bf16.mxu0 0
      %1749 = vmatpush1.bf16.xpose.msra.mxu0 0
      %1750 = vmatprep.subr.bf16.mxu0 0
      %1751 = vmatpush1.bf16.xpose.msra.mxu0 0
      %1752 = vmatprep.subr.bf16.mxu0 0
      %1753 = vmatpush1.bf16.xpose.msra.mxu0 0
      %1754 = vmatprep.subr.bf16.mxu0 0
      %1755 = vmatpush1.bf16.xpose.msra.mxu0 0
      %1756 = vmatprep.subr.bf16.mxu0 0
      %1757 = vmatpush1.bf16.xpose.msra.mxu0 0
      %1758 = vmatprep.subr.bf16.mxu0 0
      %1759 = vmatpush1.bf16.xpose.msra.mxu0 0
      %1760 = vmatprep.subr.bf16.mxu0 0
      %1761 = vmatpush1.bf16.xpose.msra.mxu0 0
      %1762 = vmatprep.subr.bf16.mxu0 0
      %1763 = vmatpush1.bf16.xpose.msra.mxu0 0
      %1764 = vmatprep.subr.bf16.mxu0 0
      %1765 = vmatpush1.bf16.xpose.msra.mxu0 0
      %1766 = vmatprep.subr.bf16.mxu0 0
      %1767 = vmatpush1.bf16.xpose.msra.mxu0 0
      %1768 = vmatprep.subr.bf16.mxu0 0
      %1769 = vmatpush1.bf16.xpose.msra.mxu0 0
      %1770 = vmatprep.subr.bf16.mxu0 0
      %1771 = vmatpush1.bf16.xpose.msra.mxu0 0
      %1772 = vmatprep.subr.bf16.mxu0 0
      %1773 = vmatpush1.bf16.xpose.msra.mxu0 0
      %1774 = vmatprep.subr.bf16.mxu0 0
      %1775 = vmatpush1.bf16.xpose.msra.mxu0 0
      %1776 = vmatprep.mubr.bf16.mxu0 %v1737
      %1777 = vmatmul.mubr.bf16.gmra.mrb[0].mxu0 %v1736
      %v1778 = vpop.f32.mrb[0].mxu0
      %v1779 = vadd.f32 0.0, %v1778
      %v1780 = vpop.f32.mrb[0].mxu0
      %v1781 = vpop.f32.mrb[0].mxu0
      %v1782 = vadd.f32 0.0, %v1781
      %v1783 = vpop.f32.mrb[0].mxu0
      %1784 = vmatprep.mubr.bf16.mxu0 %v1739
      %1785 = vmatmul.mubr.bf16.gmra.mrb[0].mxu0 %v1738
      %v1786 = vpop.f32.mrb[0].mxu0
      %v1787 = vadd.f32 0.0, %v1786
      %v1788 = vpop.f32.mrb[0].mxu0
      %v1789 = vpop.f32.mrb[0].mxu0
      %v1790 = vadd.f32 0.0, %v1789
      %v1791 = vpop.f32.mrb[0].mxu0
      %1792 = vdwg.mxu0
      %v1793 = vld [vmem:[%s6] sm:$0xff]
      %v1794 = vld [vmem:[%s6 + $0x8] sm:$0xff]
      %v1795 = vld [vmem:[%s6 + $0x10] sm:$0xff]
      %v1796 = vld [vmem:[%s6 + $0x18] sm:$0xff]
      %v1797 = vmul.f32 %v1779, %v1793
      %v1798 = vmul.f32 %v1782, %v1794
      %v1799 = vmul.f32 %v1787, %v1795
      %v1800 = vmul.f32 %v1790, %v1796
      %v1801 = vld [vmem:[%s5] sm:$0xff]
      %v1802 = vld [vmem:[%s5 + $0x8] sm:$0xff]
      %v1803 = vld [vmem:[%s5 + $0x10] sm:$0xff]
      %v1804 = vld [vmem:[%s5 + $0x18] sm:$0xff]
      %v1806 = vsel %vm334, %v1797, 0
      %v1809 = vsel %vm334, %v1798, 0
      %v1812 = vsel %vm334, %v1799, 0
      %v1815 = vsel %vm334, %v1800, 0
      %1817 = vmatprep.subr.mxu0 0.0
      %1818 = vmatpush1.msra.mxu0 %v1801
      %1819 = vmatprep.subr.mxu0 0.0
      %1820 = vmatpush1.msra.mxu0 %v1802
      %1821 = vmatprep.subr.mxu0 0.0
      %1822 = vmatpush1.msra.mxu0 %v1803
      %1823 = vmatprep.subr.mxu0 0.0
      %1824 = vmatpush1.msra.mxu0 %v1804
      %1825 = vmatprep.subr.mxu0 0.0
      %1826 = vmatpush1.msra.mxu0 0.0
      %1827 = vmatprep.subr.mxu0 0.0
      %1828 = vmatpush1.msra.mxu0 0.0
      %1829 = vmatprep.subr.mxu0 0.0
      %1830 = vmatpush1.msra.mxu0 0.0
      %1831 = vmatprep.subr.mxu0 0.0
      %1832 = vmatpush1.msra.mxu0 0.0
      %1833 = vmatprep.subr.mxu0 0.0
      %1834 = vmatpush1.msra.mxu0 0.0
      %1835 = vmatprep.subr.mxu0 0.0
      %1836 = vmatpush1.msra.mxu0 0.0
      %1837 = vmatprep.subr.mxu0 0.0
      %1838 = vmatpush1.msra.mxu0 0.0
      %1839 = vmatprep.subr.mxu0 0.0
      %1840 = vmatpush1.msra.mxu0 0.0
      %1841 = vmatprep.subr.mxu0 0.0
      %1842 = vmatpush1.msra.mxu0 0.0
      %1843 = vmatprep.subr.mxu0 0.0
      %1844 = vmatpush1.msra.mxu0 0.0
      %1845 = vmatprep.subr.mxu0 0.0
      %1846 = vmatpush1.msra.mxu0 0.0
      %1847 = vmatprep.subr.mxu0 0.0
      %1848 = vmatpush1.msra.mxu0 0.0
      %1849 = vmatprep.subr.mxu0 0.0
      %1850 = vmatpush1.msra.mxu0 0.0
      %1851 = vmatprep.subr.mxu0 0.0
      %1852 = vmatpush1.msra.mxu0 0.0
      %1853 = vmatprep.subr.mxu0 0.0
      %1854 = vmatpush1.msra.mxu0 0.0
      %1855 = vmatprep.subr.mxu0 0.0
      %1856 = vmatpush1.msra.mxu0 0.0
      %1857 = vmatprep.subr.mxu0 0.0
      %1858 = vmatpush1.msra.mxu0 0.0
      %1859 = vmatprep.subr.mxu0 0.0
      %1860 = vmatpush1.msra.mxu0 0.0
      %1861 = vmatprep.subr.mxu0 0.0
      %1862 = vmatpush1.msra.mxu0 0.0
      %1863 = vmatprep.subr.mxu0 0.0
      %1864 = vmatpush1.msra.mxu0 0.0
      %1865 = vmatprep.subr.mxu0 0.0
      %1866 = vmatpush1.msra.mxu0 0.0
      %1867 = vmatprep.subr.mxu0 0.0
      %1868 = vmatpush1.msra.mxu0 0.0
      %1869 = vmatprep.subr.mxu0 0.0
      %1870 = vmatpush1.msra.mxu0 0.0
      %1871 = vmatprep.subr.mxu0 0.0
      %1872 = vmatpush1.msra.mxu0 0.0
      %1873 = vmatprep.subr.mxu0 0.0
      %1874 = vmatpush1.msra.mxu0 0.0
      %1875 = vmatprep.subr.mxu0 0.0
      %1876 = vmatpush1.msra.mxu0 0.0
      %1877 = vmatprep.subr.mxu0 0.0
      %1878 = vmatpush1.msra.mxu0 0.0
      %1879 = vmatprep.subr.mxu0 0.0
      %1880 = vmatpush1.msra.mxu0 0.0
      %1881 = vmatprep.mubr.f32.mxu0 0.0
      %1882 = vmatmul.mubr.f32.gmra.mrb[0].mxu0 %v1806
      %v1883 = vpop.f32.mrb[0].mxu0
      %v1884 = vadd.f32 0.0, %v1883
      %v1885 = vpop.f32.mrb[0].mxu0
      %1886 = vmatprep.mubr.f32.mxu0 0.0
      %1887 = vmatmul.mubr.f32.gmra.mrb[0].mxu0 %v1809
      %v1888 = vpop.f32.mrb[0].mxu0
      %v1889 = vadd.f32 0.0, %v1888
      %v1890 = vpop.f32.mrb[0].mxu0
      %1891 = vmatprep.mubr.f32.mxu0 0.0
      %1892 = vmatmul.mubr.f32.gmra.mrb[0].mxu0 %v1812
      %v1893 = vpop.f32.mrb[0].mxu0
      %v1894 = vadd.f32 0.0, %v1893
      %v1895 = vpop.f32.mrb[0].mxu0
      %1896 = vmatprep.mubr.f32.mxu0 0.0
      %1897 = vmatmul.mubr.f32.gmra.mrb[0].mxu0 %v1815
      %v1898 = vpop.f32.mrb[0].mxu0
      %v1899 = vadd.f32 0.0, %v1898
      %v1900 = vpop.f32.mrb[0].mxu0
      %1901 = vdwg.mxu0
      %v1902 = vld [vmem:[%s4] sm:$0xff]
      %v1903 = vld [vmem:[%s4 + $0x8] sm:$0xff]
      %v1904 = vld [vmem:[%s4 + $0x10] sm:$0xff]
      %v1905 = vld [vmem:[%s4 + $0x18] sm:$0xff]
      %s1906 = scalar_lea.vmem %s5, 32
      %v1907 = vld [vmem:[%s1906] sm:$0xff]
      %v1908 = vld [vmem:[%s1906 + $0x8] sm:$0xff]
      %v1909 = vld [vmem:[%s1906 + $0x10] sm:$0xff]
      %v1910 = vld [vmem:[%s1906 + $0x18] sm:$0xff]
      %1911 = vmatprep.subr.mxu0 0.0
      %1912 = vmatpush1.msra.mxu0 %v1907
      %1913 = vmatprep.subr.mxu0 0.0
      %1914 = vmatpush1.msra.mxu0 %v1908
      %1915 = vmatprep.subr.mxu0 0.0
      %1916 = vmatpush1.msra.mxu0 %v1909
      %1917 = vmatprep.subr.mxu0 0.0
      %1918 = vmatpush1.msra.mxu0 %v1910
      %1919 = vmatprep.subr.mxu0 0.0
      %1920 = vmatpush1.msra.mxu0 0.0
      %1921 = vmatprep.subr.mxu0 0.0
      %1922 = vmatpush1.msra.mxu0 0.0
      %1923 = vmatprep.subr.mxu0 0.0
      %1924 = vmatpush1.msra.mxu0 0.0
      %1925 = vmatprep.subr.mxu0 0.0
      %1926 = vmatpush1.msra.mxu0 0.0
      %1927 = vmatprep.subr.mxu0 0.0
      %1928 = vmatpush1.msra.mxu0 0.0
      %1929 = vmatprep.subr.mxu0 0.0
      %1930 = vmatpush1.msra.mxu0 0.0
      %1931 = vmatprep.subr.mxu0 0.0
      %1932 = vmatpush1.msra.mxu0 0.0
      %1933 = vmatprep.subr.mxu0 0.0
      %1934 = vmatpush1.msra.mxu0 0.0
      %1935 = vmatprep.subr.mxu0 0.0
      %1936 = vmatpush1.msra.mxu0 0.0
      %1937 = vmatprep.subr.mxu0 0.0
      %1938 = vmatpush1.msra.mxu0 0.0
      %1939 = vmatprep.subr.mxu0 0.0
      %1940 = vmatpush1.msra.mxu0 0.0
      %1941 = vmatprep.subr.mxu0 0.0
      %1942 = vmatpush1.msra.mxu0 0.0
      %1943 = vmatprep.subr.mxu0 0.0
      %1944 = vmatpush1.msra.mxu0 0.0
      %1945 = vmatprep.subr.mxu0 0.0
      %1946 = vmatpush1.msra.mxu0 0.0
      %1947 = vmatprep.subr.mxu0 0.0
      %1948 = vmatpush1.msra.mxu0 0.0
      %1949 = vmatprep.subr.mxu0 0.0
      %1950 = vmatpush1.msra.mxu0 0.0
      %1951 = vmatprep.subr.mxu0 0.0
      %1952 = vmatpush1.msra.mxu0 0.0
      %1953 = vmatprep.subr.mxu0 0.0
      %1954 = vmatpush1.msra.mxu0 0.0
      %1955 = vmatprep.subr.mxu0 0.0
      %1956 = vmatpush1.msra.mxu0 0.0
      %1957 = vmatprep.subr.mxu0 0.0
      %1958 = vmatpush1.msra.mxu0 0.0
      %1959 = vmatprep.subr.mxu0 0.0
      %1960 = vmatpush1.msra.mxu0 0.0
      %1961 = vmatprep.subr.mxu0 0.0
      %1962 = vmatpush1.msra.mxu0 0.0
      %1963 = vmatprep.subr.mxu0 0.0
      %1964 = vmatpush1.msra.mxu0 0.0
      %1965 = vmatprep.subr.mxu0 0.0
      %1966 = vmatpush1.msra.mxu0 0.0
      %1967 = vmatprep.subr.mxu0 0.0
      %1968 = vmatpush1.msra.mxu0 0.0
      %1969 = vmatprep.subr.mxu0 0.0
      %1970 = vmatpush1.msra.mxu0 0.0
      %1971 = vmatprep.subr.mxu0 0.0
      %1972 = vmatpush1.msra.mxu0 0.0
      %1973 = vmatprep.subr.mxu0 0.0
      %1974 = vmatpush1.msra.mxu0 0.0
      %1975 = vmatprep.mubr.f32.mxu0 0.0
      %1976 = vmatmul.mubr.f32.gmra.mrb[0].mxu0 %v1806
      %v1977 = vpop.f32.mrb[0].mxu0
      %v1978 = vadd.f32 0.0, %v1977
      %v1979 = vpop.f32.mrb[0].mxu0
      %1980 = vmatprep.mubr.f32.mxu0 0.0
      %1981 = vmatmul.mubr.f32.gmra.mrb[0].mxu0 %v1809
      %v1982 = vpop.f32.mrb[0].mxu0
      %v1983 = vadd.f32 0.0, %v1982
      %v1984 = vpop.f32.mrb[0].mxu0
      %1985 = vmatprep.mubr.f32.mxu0 0.0
      %1986 = vmatmul.mubr.f32.gmra.mrb[0].mxu0 %v1812
      %v1987 = vpop.f32.mrb[0].mxu0
      %v1988 = vadd.f32 0.0, %v1987
      %v1989 = vpop.f32.mrb[0].mxu0
      %1990 = vmatprep.mubr.f32.mxu0 0.0
      %1991 = vmatmul.mubr.f32.gmra.mrb[0].mxu0 %v1815
      %v1992 = vpop.f32.mrb[0].mxu0
      %v1993 = vadd.f32 0.0, %v1992
      %v1994 = vpop.f32.mrb[0].mxu0
      %1995 = vdwg.mxu0
      %s1996 = scalar_lea.vmem %s4, 32
      %v1997 = vld [vmem:[%s1996] sm:$0xff]
      %v1998 = vld [vmem:[%s1996 + $0x8] sm:$0xff]
      %v1999 = vld [vmem:[%s1996 + $0x10] sm:$0xff]
      %v2000 = vld [vmem:[%s1996 + $0x18] sm:$0xff]
      %v2002 = vsel %vm334, %v1997, 0
      %v2005 = vsel %vm334, %v1998, 0
      %v2008 = vsel %vm334, %v1999, 0
      %v2011 = vsel %vm334, %v2000, 0
      %2013 = vmatprep.subr.mxu0 0.0
      %2014 = vmatpush1.msra.mxu0 %v1978
      %2015 = vmatprep.subr.mxu0 0.0
      %2016 = vmatpush1.msra.mxu0 %v1983
      %2017 = vmatprep.subr.mxu0 0.0
      %2018 = vmatpush1.msra.mxu0 %v1988
      %2019 = vmatprep.subr.mxu0 0.0
      %2020 = vmatpush1.msra.mxu0 %v1993
      %2021 = vmatprep.subr.mxu0 0.0
      %2022 = vmatpush1.msra.mxu0 0.0
      %2023 = vmatprep.subr.mxu0 0.0
      %2024 = vmatpush1.msra.mxu0 0.0
      %2025 = vmatprep.subr.mxu0 0.0
      %2026 = vmatpush1.msra.mxu0 0.0
      %2027 = vmatprep.subr.mxu0 0.0
      %2028 = vmatpush1.msra.mxu0 0.0
      %2029 = vmatprep.subr.mxu0 0.0
      %2030 = vmatpush1.msra.mxu0 0.0
      %2031 = vmatprep.subr.mxu0 0.0
      %2032 = vmatpush1.msra.mxu0 0.0
      %2033 = vmatprep.subr.mxu0 0.0
      %2034 = vmatpush1.msra.mxu0 0.0
      %2035 = vmatprep.subr.mxu0 0.0
      %2036 = vmatpush1.msra.mxu0 0.0
      %2037 = vmatprep.subr.mxu0 0.0
      %2038 = vmatpush1.msra.mxu0 0.0
      %2039 = vmatprep.subr.mxu0 0.0
      %2040 = vmatpush1.msra.mxu0 0.0
      %2041 = vmatprep.subr.mxu0 0.0
      %2042 = vmatpush1.msra.mxu0 0.0
      %2043 = vmatprep.subr.mxu0 0.0
      %2044 = vmatpush1.msra.mxu0 0.0
      %2045 = vmatprep.subr.mxu0 0.0
      %2046 = vmatpush1.msra.mxu0 0.0
      %2047 = vmatprep.subr.mxu0 0.0
      %2048 = vmatpush1.msra.mxu0 0.0
      %2049 = vmatprep.subr.mxu0 0.0
      %2050 = vmatpush1.msra.mxu0 0.0
      %2051 = vmatprep.subr.mxu0 0.0
      %2052 = vmatpush1.msra.mxu0 0.0
      %2053 = vmatprep.subr.mxu0 0.0
      %2054 = vmatpush1.msra.mxu0 0.0
      %2055 = vmatprep.subr.mxu0 0.0
      %2056 = vmatpush1.msra.mxu0 0.0
      %2057 = vmatprep.subr.mxu0 0.0
      %2058 = vmatpush1.msra.mxu0 0.0
      %2059 = vmatprep.subr.mxu0 0.0
      %2060 = vmatpush1.msra.mxu0 0.0
      %2061 = vmatprep.subr.mxu0 0.0
      %2062 = vmatpush1.msra.mxu0 0.0
      %2063 = vmatprep.subr.mxu0 0.0
      %2064 = vmatpush1.msra.mxu0 0.0
      %2065 = vmatprep.subr.mxu0 0.0
      %2066 = vmatpush1.msra.mxu0 0.0
      %2067 = vmatprep.subr.mxu0 0.0
      %2068 = vmatpush1.msra.mxu0 0.0
      %2069 = vmatprep.subr.mxu0 0.0
      %2070 = vmatpush1.msra.mxu0 0.0
      %2071 = vmatprep.subr.mxu0 0.0
      %2072 = vmatpush1.msra.mxu0 0.0
      %2073 = vmatprep.subr.mxu0 0.0
      %2074 = vmatpush1.msra.mxu0 0.0
      %2075 = vmatprep.subr.mxu0 0.0
      %2076 = vmatpush1.msra.mxu0 0.0
      %2077 = vmatprep.mubr.f32.mxu0 0.0
      %2078 = vmatmul.mubr.f32.gmra.mrb[0].mxu0 %v2002
      %v2079 = vpop.f32.mrb[0].mxu0
      %v2080 = vadd.f32 0.0, %v2079
      %v2081 = vpop.f32.mrb[0].mxu0
      %2082 = vmatprep.mubr.f32.mxu0 0.0
      %2083 = vmatmul.mubr.f32.gmra.mrb[0].mxu0 %v2005
      %v2084 = vpop.f32.mrb[0].mxu0
      %v2085 = vadd.f32 0.0, %v2084
      %v2086 = vpop.f32.mrb[0].mxu0
      %2087 = vmatprep.mubr.f32.mxu0 0.0
      %2088 = vmatmul.mubr.f32.gmra.mrb[0].mxu0 %v2008
      %v2089 = vpop.f32.mrb[0].mxu0
      %v2090 = vadd.f32 0.0, %v2089
      %v2091 = vpop.f32.mrb[0].mxu0
      %2092 = vmatprep.mubr.f32.mxu0 0.0
      %2093 = vmatmul.mubr.f32.gmra.mrb[0].mxu0 %v2011
      %v2094 = vpop.f32.mrb[0].mxu0
      %v2095 = vadd.f32 0.0, %v2094
      %v2096 = vpop.f32.mrb[0].mxu0
      %2097 = vdwg.mxu0
      %v2099 = vsel %vm334, %v1902, 0
      %v2102 = vsel %vm334, %v1903, 0
      %v2105 = vsel %vm334, %v1904, 0
      %v2108 = vsel %vm334, %v1905, 0
      %2110 = vmatprep.subr.mxu0 0.0
      %2111 = vmatpush1.msra.mxu0 %v1884
      %2112 = vmatprep.subr.mxu0 0.0
      %2113 = vmatpush1.msra.mxu0 %v1889
      %2114 = vmatprep.subr.mxu0 0.0
      %2115 = vmatpush1.msra.mxu0 %v1894
      %2116 = vmatprep.subr.mxu0 0.0
      %2117 = vmatpush1.msra.mxu0 %v1899
      %2118 = vmatprep.subr.mxu0 0.0
      %2119 = vmatpush1.msra.mxu0 0.0
      %2120 = vmatprep.subr.mxu0 0.0
      %2121 = vmatpush1.msra.mxu0 0.0
      %2122 = vmatprep.subr.mxu0 0.0
      %2123 = vmatpush1.msra.mxu0 0.0
      %2124 = vmatprep.subr.mxu0 0.0
      %2125 = vmatpush1.msra.mxu0 0.0
      %2126 = vmatprep.subr.mxu0 0.0
      %2127 = vmatpush1.msra.mxu0 0.0
      %2128 = vmatprep.subr.mxu0 0.0
      %2129 = vmatpush1.msra.mxu0 0.0
      %2130 = vmatprep.subr.mxu0 0.0
      %2131 = vmatpush1.msra.mxu0 0.0
      %2132 = vmatprep.subr.mxu0 0.0
      %2133 = vmatpush1.msra.mxu0 0.0
      %2134 = vmatprep.subr.mxu0 0.0
      %2135 = vmatpush1.msra.mxu0 0.0
      %2136 = vmatprep.subr.mxu0 0.0
      %2137 = vmatpush1.msra.mxu0 0.0
      %2138 = vmatprep.subr.mxu0 0.0
      %2139 = vmatpush1.msra.mxu0 0.0
      %2140 = vmatprep.subr.mxu0 0.0
      %2141 = vmatpush1.msra.mxu0 0.0
      %2142 = vmatprep.subr.mxu0 0.0
      %2143 = vmatpush1.msra.mxu0 0.0
      %2144 = vmatprep.subr.mxu0 0.0
      %2145 = vmatpush1.msra.mxu0 0.0
      %2146 = vmatprep.subr.mxu0 0.0
      %2147 = vmatpush1.msra.mxu0 0.0
      %2148 = vmatprep.subr.mxu0 0.0
      %2149 = vmatpush1.msra.mxu0 0.0
      %2150 = vmatprep.subr.mxu0 0.0
      %2151 = vmatpush1.msra.mxu0 0.0
      %2152 = vmatprep.subr.mxu0 0.0
      %2153 = vmatpush1.msra.mxu0 0.0
      %2154 = vmatprep.subr.mxu0 0.0
      %2155 = vmatpush1.msra.mxu0 0.0
      %2156 = vmatprep.subr.mxu0 0.0
      %2157 = vmatpush1.msra.mxu0 0.0
      %2158 = vmatprep.subr.mxu0 0.0
      %2159 = vmatpush1.msra.mxu0 0.0
      %2160 = vmatprep.subr.mxu0 0.0
      %2161 = vmatpush1.msra.mxu0 0.0
      %2162 = vmatprep.subr.mxu0 0.0
      %2163 = vmatpush1.msra.mxu0 0.0
      %2164 = vmatprep.subr.mxu0 0.0
      %2165 = vmatpush1.msra.mxu0 0.0
      %2166 = vmatprep.subr.mxu0 0.0
      %2167 = vmatpush1.msra.mxu0 0.0
      %2168 = vmatprep.subr.mxu0 0.0
      %2169 = vmatpush1.msra.mxu0 0.0
      %2170 = vmatprep.subr.mxu0 0.0
      %2171 = vmatpush1.msra.mxu0 0.0
      %2172 = vmatprep.subr.mxu0 0.0
      %2173 = vmatpush1.msra.mxu0 0.0
      %2174 = vmatprep.mubr.f32.mxu0 0.0
      %2175 = vmatmul.mubr.f32.gmra.mrb[0].mxu0 %v2099
      %v2176 = vpop.f32.mrb[0].mxu0
      %v2177 = vadd.f32 %v2080, %v2176
      %v2178 = vpop.f32.mrb[0].mxu0
      %2179 = vmatprep.mubr.f32.mxu0 0.0
      %2180 = vmatmul.mubr.f32.gmra.mrb[0].mxu0 %v2102
      %v2181 = vpop.f32.mrb[0].mxu0
      %v2182 = vadd.f32 %v2085, %v2181
      %v2183 = vpop.f32.mrb[0].mxu0
      %2184 = vmatprep.mubr.f32.mxu0 0.0
      %2185 = vmatmul.mubr.f32.gmra.mrb[0].mxu0 %v2105
      %v2186 = vpop.f32.mrb[0].mxu0
      %v2187 = vadd.f32 %v2090, %v2186
      %v2188 = vpop.f32.mrb[0].mxu0
      %2189 = vmatprep.mubr.f32.mxu0 0.0
      %2190 = vmatmul.mubr.f32.gmra.mrb[0].mxu0 %v2108
      %v2191 = vpop.f32.mrb[0].mxu0
      %v2192 = vadd.f32 %v2095, %v2191
      %v2193 = vpop.f32.mrb[0].mxu0
      %2194 = vdwg.mxu0
      %s2195 = scalar_lea.vmem %s5, 64
      %v2196 = vld [vmem:[%s2195] sm:$0xff]
      %v2197 = vld [vmem:[%s2195 + $0x8] sm:$0xff]
      %v2198 = vld [vmem:[%s2195 + $0x10] sm:$0xff]
      %v2199 = vld [vmem:[%s2195 + $0x18] sm:$0xff]
      %2200 = vmatprep.subr.mxu0 0.0
      %2201 = vmatpush1.msra.mxu0 %v2196
      %2202 = vmatprep.subr.mxu0 0.0
      %2203 = vmatpush1.msra.mxu0 %v2197
      %2204 = vmatprep.subr.mxu0 0.0
      %2205 = vmatpush1.msra.mxu0 %v2198
      %2206 = vmatprep.subr.mxu0 0.0
      %2207 = vmatpush1.msra.mxu0 %v2199
      %2208 = vmatprep.subr.mxu0 0.0
      %2209 = vmatpush1.msra.mxu0 0.0
      %2210 = vmatprep.subr.mxu0 0.0
      %2211 = vmatpush1.msra.mxu0 0.0
      %2212 = vmatprep.subr.mxu0 0.0
      %2213 = vmatpush1.msra.mxu0 0.0
      %2214 = vmatprep.subr.mxu0 0.0
      %2215 = vmatpush1.msra.mxu0 0.0
      %2216 = vmatprep.subr.mxu0 0.0
      %2217 = vmatpush1.msra.mxu0 0.0
      %2218 = vmatprep.subr.mxu0 0.0
      %2219 = vmatpush1.msra.mxu0 0.0
      %2220 = vmatprep.subr.mxu0 0.0
      %2221 = vmatpush1.msra.mxu0 0.0
      %2222 = vmatprep.subr.mxu0 0.0
      %2223 = vmatpush1.msra.mxu0 0.0
      %2224 = vmatprep.subr.mxu0 0.0
      %2225 = vmatpush1.msra.mxu0 0.0
      %2226 = vmatprep.subr.mxu0 0.0
      %2227 = vmatpush1.msra.mxu0 0.0
      %2228 = vmatprep.subr.mxu0 0.0
      %2229 = vmatpush1.msra.mxu0 0.0
      %2230 = vmatprep.subr.mxu0 0.0
      %2231 = vmatpush1.msra.mxu0 0.0
      %2232 = vmatprep.subr.mxu0 0.0
      %2233 = vmatpush1.msra.mxu0 0.0
      %2234 = vmatprep.subr.mxu0 0.0
      %2235 = vmatpush1.msra.mxu0 0.0
      %2236 = vmatprep.subr.mxu0 0.0
      %2237 = vmatpush1.msra.mxu0 0.0
      %2238 = vmatprep.subr.mxu0 0.0
      %2239 = vmatpush1.msra.mxu0 0.0
      %2240 = vmatprep.subr.mxu0 0.0
      %2241 = vmatpush1.msra.mxu0 0.0
      %2242 = vmatprep.subr.mxu0 0.0
      %2243 = vmatpush1.msra.mxu0 0.0
      %2244 = vmatprep.subr.mxu0 0.0
      %2245 = vmatpush1.msra.mxu0 0.0
      %2246 = vmatprep.subr.mxu0 0.0
      %2247 = vmatpush1.msra.mxu0 0.0
      %2248 = vmatprep.subr.mxu0 0.0
      %2249 = vmatpush1.msra.mxu0 0.0
      %2250 = vmatprep.subr.mxu0 0.0
      %2251 = vmatpush1.msra.mxu0 0.0
      %2252 = vmatprep.subr.mxu0 0.0
      %2253 = vmatpush1.msra.mxu0 0.0
      %2254 = vmatprep.subr.mxu0 0.0
      %2255 = vmatpush1.msra.mxu0 0.0
      %2256 = vmatprep.subr.mxu0 0.0
      %2257 = vmatpush1.msra.mxu0 0.0
      %2258 = vmatprep.subr.mxu0 0.0
      %2259 = vmatpush1.msra.mxu0 0.0
      %2260 = vmatprep.subr.mxu0 0.0
      %2261 = vmatpush1.msra.mxu0 0.0
      %2262 = vmatprep.subr.mxu0 0.0
      %2263 = vmatpush1.msra.mxu0 0.0
      %2264 = vmatprep.mubr.f32.mxu0 0.0
      %2265 = vmatmul.mubr.f32.gmra.mrb[0].mxu0 %v1806
      %v2266 = vpop.f32.mrb[0].mxu0
      %v2267 = vadd.f32 0.0, %v2266
      %v2268 = vpop.f32.mrb[0].mxu0
      %2269 = vmatprep.mubr.f32.mxu0 0.0
      %2270 = vmatmul.mubr.f32.gmra.mrb[0].mxu0 %v1809
      %v2271 = vpop.f32.mrb[0].mxu0
      %v2272 = vadd.f32 0.0, %v2271
      %v2273 = vpop.f32.mrb[0].mxu0
      %2274 = vmatprep.mubr.f32.mxu0 0.0
      %2275 = vmatmul.mubr.f32.gmra.mrb[0].mxu0 %v1812
      %v2276 = vpop.f32.mrb[0].mxu0
      %v2277 = vadd.f32 0.0, %v2276
      %v2278 = vpop.f32.mrb[0].mxu0
      %2279 = vmatprep.mubr.f32.mxu0 0.0
      %2280 = vmatmul.mubr.f32.gmra.mrb[0].mxu0 %v1815
      %v2281 = vpop.f32.mrb[0].mxu0
      %v2282 = vadd.f32 0.0, %v2281
      %v2283 = vpop.f32.mrb[0].mxu0
      %2284 = vdwg.mxu0
      %s2285 = scalar_lea.vmem %s4, 64
      %v2286 = vld [vmem:[%s2285] sm:$0xff]
      %v2287 = vld [vmem:[%s2285 + $0x8] sm:$0xff]
      %v2288 = vld [vmem:[%s2285 + $0x10] sm:$0xff]
      %v2289 = vld [vmem:[%s2285 + $0x18] sm:$0xff]
      %v2291 = vsel %vm334, %v2286, 0
      %v2294 = vsel %vm334, %v2287, 0
      %v2297 = vsel %vm334, %v2288, 0
      %v2300 = vsel %vm334, %v2289, 0
      %2302 = vmatprep.subr.mxu0 0.0
      %2303 = vmatpush1.msra.mxu0 %v2267
      %2304 = vmatprep.subr.mxu0 0.0
      %2305 = vmatpush1.msra.mxu0 %v2272
      %2306 = vmatprep.subr.mxu0 0.0
      %2307 = vmatpush1.msra.mxu0 %v2277
      %2308 = vmatprep.subr.mxu0 0.0
      %2309 = vmatpush1.msra.mxu0 %v2282
      %2310 = vmatprep.subr.mxu0 0.0
      %2311 = vmatpush1.msra.mxu0 0.0
      %2312 = vmatprep.subr.mxu0 0.0
      %2313 = vmatpush1.msra.mxu0 0.0
      %2314 = vmatprep.subr.mxu0 0.0
      %2315 = vmatpush1.msra.mxu0 0.0
      %2316 = vmatprep.subr.mxu0 0.0
      %2317 = vmatpush1.msra.mxu0 0.0
      %2318 = vmatprep.subr.mxu0 0.0
      %2319 = vmatpush1.msra.mxu0 0.0
      %2320 = vmatprep.subr.mxu0 0.0
      %2321 = vmatpush1.msra.mxu0 0.0
      %2322 = vmatprep.subr.mxu0 0.0
      %2323 = vmatpush1.msra.mxu0 0.0
      %2324 = vmatprep.subr.mxu0 0.0
      %2325 = vmatpush1.msra.mxu0 0.0
      %2326 = vmatprep.subr.mxu0 0.0
      %2327 = vmatpush1.msra.mxu0 0.0
      %2328 = vmatprep.subr.mxu0 0.0
      %2329 = vmatpush1.msra.mxu0 0.0
      %2330 = vmatprep.subr.mxu0 0.0
      %2331 = vmatpush1.msra.mxu0 0.0
      %2332 = vmatprep.subr.mxu0 0.0
      %2333 = vmatpush1.msra.mxu0 0.0
      %2334 = vmatprep.subr.mxu0 0.0
      %2335 = vmatpush1.msra.mxu0 0.0
      %2336 = vmatprep.subr.mxu0 0.0
      %2337 = vmatpush1.msra.mxu0 0.0
      %2338 = vmatprep.subr.mxu0 0.0
      %2339 = vmatpush1.msra.mxu0 0.0
      %2340 = vmatprep.subr.mxu0 0.0
      %2341 = vmatpush1.msra.mxu0 0.0
      %2342 = vmatprep.subr.mxu0 0.0
      %2343 = vmatpush1.msra.mxu0 0.0
      %2344 = vmatprep.subr.mxu0 0.0
      %2345 = vmatpush1.msra.mxu0 0.0
      %2346 = vmatprep.subr.mxu0 0.0
      %2347 = vmatpush1.msra.mxu0 0.0
      %2348 = vmatprep.subr.mxu0 0.0
      %2349 = vmatpush1.msra.mxu0 0.0
      %2350 = vmatprep.subr.mxu0 0.0
      %2351 = vmatpush1.msra.mxu0 0.0
      %2352 = vmatprep.subr.mxu0 0.0
      %2353 = vmatpush1.msra.mxu0 0.0
      %2354 = vmatprep.subr.mxu0 0.0
      %2355 = vmatpush1.msra.mxu0 0.0
      %2356 = vmatprep.subr.mxu0 0.0
      %2357 = vmatpush1.msra.mxu0 0.0
      %2358 = vmatprep.subr.mxu0 0.0
      %2359 = vmatpush1.msra.mxu0 0.0
      %2360 = vmatprep.subr.mxu0 0.0
      %2361 = vmatpush1.msra.mxu0 0.0
      %2362 = vmatprep.subr.mxu0 0.0
      %2363 = vmatpush1.msra.mxu0 0.0
      %2364 = vmatprep.subr.mxu0 0.0
      %2365 = vmatpush1.msra.mxu0 0.0
      %2366 = vmatprep.mubr.f32.mxu0 0.0
      %2367 = vmatmul.mubr.f32.gmra.mrb[0].mxu0 %v2291
      %v2368 = vpop.f32.mrb[0].mxu0
      %v2369 = vadd.f32 0.0, %v2368
      %v2370 = vpop.f32.mrb[0].mxu0
      %2371 = vmatprep.mubr.f32.mxu0 0.0
      %2372 = vmatmul.mubr.f32.gmra.mrb[0].mxu0 %v2294
      %v2373 = vpop.f32.mrb[0].mxu0
      %v2374 = vadd.f32 0.0, %v2373
      %v2375 = vpop.f32.mrb[0].mxu0
      %2376 = vmatprep.mubr.f32.mxu0 0.0
      %2377 = vmatmul.mubr.f32.gmra.mrb[0].mxu0 %v2297
      %v2378 = vpop.f32.mrb[0].mxu0
      %v2379 = vadd.f32 0.0, %v2378
      %v2380 = vpop.f32.mrb[0].mxu0
      %2381 = vmatprep.mubr.f32.mxu0 0.0
      %2382 = vmatmul.mubr.f32.gmra.mrb[0].mxu0 %v2300
      %v2383 = vpop.f32.mrb[0].mxu0
      %v2384 = vadd.f32 0.0, %v2383
      %v2385 = vpop.f32.mrb[0].mxu0
      %2386 = vdwg.mxu0
      %v2387 = vadd.f32 %v2177, %v2369
      %v2388 = vadd.f32 %v2182, %v2374
      %v2389 = vadd.f32 %v2187, %v2379
      %v2390 = vadd.f32 %v2192, %v2384
      %v2391 = vsub.f32 %v1793, 1.0
      %v2392 = vsub.f32 %v1794, 1.0
      %v2393 = vsub.f32 %v1795, 1.0
      %v2394 = vsub.f32 %v1796, 1.0
      %v2395 = vmul.f32 %v2391, 1e+30
      %v2396 = vmul.f32 %v2392, 1e+30
      %v2397 = vmul.f32 %v2393, 1e+30
      %v2398 = vmul.f32 %v2394, 1e+30
      %v2399 = vadd.f32 %v2387, %v2395
      %v2400 = vadd.f32 %v2388, %v2396
      %v2401 = vadd.f32 %v2389, %v2397
      %v2402 = vadd.f32 %v2390, %v2398
      %v2403 = vsel %vm334, %v2399, -inf
      %2404 = vmax.xlane.f32.xlu0 %v2403
      %v2405 = vpop.xlane.xlu0 %2404
      %v2406 = vsel %vm334, %v2400, -inf
      %2407 = vmax.xlane.f32.xlu0 %v2406
      %v2408 = vpop.xlane.xlu0 %2407
      %v2409 = vsel %vm334, %v2401, -inf
      %2410 = vmax.xlane.f32.xlu0 %v2409
      %v2411 = vpop.xlane.xlu0 %2410
      %v2412 = vsel %vm334, %v2402, -inf
      %2413 = vmax.xlane.f32.xlu0 %v2412
      %v2414 = vpop.xlane.xlu0 %2413
      %v2415 = vsub.f32 %v2399, %v2405
      %v2416 = vsub.f32 %v2400, %v2408
      %v2417 = vsub.f32 %v2401, %v2411
      %v2418 = vsub.f32 %v2402, %v2414
      %v2419 = vmul.f32 %v2415, 1.442695
      %v2420 = vpow.pop %v2419
      %v2421 = vmul.f32 %v2416, 1.442695
      %v2422 = vpow.pop %v2421
      %v2423 = vmul.f32 %v2417, 1.442695
      %v2424 = vpow.pop %v2423
      %v2425 = vmul.f32 %v2418, 1.442695
      %v2426 = vpow.pop %v2425
      %v2427 = vsel %vm334, %v2420, 0.0
      %2428 = vadd.xlane.f32.xlu0 %v2427
      %v2429 = vpop.xlane.xlu0 %2428
      %v2430 = vsel %vm334, %v2422, 0.0
      %2431 = vadd.xlane.f32.xlu0 %v2430
      %v2432 = vpop.xlane.xlu0 %2431
      %v2433 = vsel %vm334, %v2424, 0.0
      %2434 = vadd.xlane.f32.xlu0 %v2433
      %v2435 = vpop.xlane.xlu0 %2434
      %v2436 = vsel %vm334, %v2426, 0.0
      %2437 = vadd.xlane.f32.xlu0 %v2436
      %v2438 = vpop.xlane.xlu0 %2437
      %v2439 = vrcp.pop %v2429
      %v2440 = vrcp.pop %v2432
      %v2441 = vrcp.pop %v2435
      %v2442 = vrcp.pop %v2438
      %v2443 = vmul.f32 %v2420, %v2439
      %v2444 = vmul.f32 %v2422, %v2440
      %v2445 = vmul.f32 %v2424, %v2441
      %v2446 = vmul.f32 %v2426, %v2442
      %v2447 = vpack.c.bf16 %v2444, %v2443
      %v2448 = vpack.c.bf16 %v2446, %v2445
      %v2449 = vpack.c.bf16 %v1658, %v1656
      %v2450 = vpack.c.bf16 %v1659, %v1657
      %v2451 = vpack.c.bf16 %v1662, %v1660
      %v2452 = vpack.c.bf16 %v1663, %v1661
      %v2454 = vsel %vm334, %v2447, 0
      %v2457 = vsel %vm334, %v2448, 0
      %2459 = vmatprep.subr.bf16.mxu0 %v2450
      %2460 = vmatpush1.bf16.msra.mxu0 %v2449
      %2461 = vmatprep.subr.bf16.mxu0 %v2452
      %2462 = vmatpush1.bf16.msra.mxu0 %v2451
      %2463 = vmatprep.subr.bf16.mxu0 0
      %2464 = vmatpush1.bf16.msra.mxu0 0
      %2465 = vmatprep.subr.bf16.mxu0 0
      %2466 = vmatpush1.bf16.msra.mxu0 0
      %2467 = vmatprep.subr.bf16.mxu0 0
      %2468 = vmatpush1.bf16.msra.mxu0 0
      %2469 = vmatprep.subr.bf16.mxu0 0
      %2470 = vmatpush1.bf16.msra.mxu0 0
      %2471 = vmatprep.subr.bf16.mxu0 0
      %2472 = vmatpush1.bf16.msra.mxu0 0
      %2473 = vmatprep.subr.bf16.mxu0 0
      %2474 = vmatpush1.bf16.msra.mxu0 0
      %2475 = vmatprep.subr.bf16.mxu0 0
      %2476 = vmatpush1.bf16.msra.mxu0 0
      %2477 = vmatprep.subr.bf16.mxu0 0
      %2478 = vmatpush1.bf16.msra.mxu0 0
      %2479 = vmatprep.subr.bf16.mxu0 0
      %2480 = vmatpush1.bf16.msra.mxu0 0
      %2481 = vmatprep.subr.bf16.mxu0 0
      %2482 = vmatpush1.bf16.msra.mxu0 0
      %2483 = vmatprep.subr.bf16.mxu0 0
      %2484 = vmatpush1.bf16.msra.mxu0 0
      %2485 = vmatprep.subr.bf16.mxu0 0
      %2486 = vmatpush1.bf16.msra.mxu0 0
      %2487 = vmatprep.subr.bf16.mxu0 0
      %2488 = vmatpush1.bf16.msra.mxu0 0
      %2489 = vmatprep.subr.bf16.mxu0 0
      %2490 = vmatpush1.bf16.msra.mxu0 0
      %2491 = vmatprep.mubr.bf16.mxu0 0
      %2492 = vmatmul.mubr.bf16.gmra.mrb[0].mxu0 %v2454
      %v2493 = vpop.f32.mrb[0].mxu0
      %v2494 = vadd.f32 0.0, %v2493
      %v2495 = vpop.f32.mrb[0].mxu0
      %v2496 = vadd.f32 0.0, %v2495
      %v2497 = vpop.f32.mrb[0].mxu0
      %v2498 = vadd.f32 0.0, %v2497
      %v2499 = vpop.f32.mrb[0].mxu0
      %v2500 = vadd.f32 0.0, %v2499
      %2501 = vmatprep.mubr.bf16.mxu0 0
      %2502 = vmatmul.mubr.bf16.gmra.mrb[0].mxu0 %v2457
      %v2503 = vpop.f32.mrb[0].mxu0
      %v2504 = vadd.f32 0.0, %v2503
      %v2505 = vpop.f32.mrb[0].mxu0
      %v2506 = vadd.f32 0.0, %v2505
      %v2507 = vpop.f32.mrb[0].mxu0
      %v2508 = vadd.f32 0.0, %v2507
      %v2509 = vpop.f32.mrb[0].mxu0
      %v2510 = vadd.f32 0.0, %v2509
      %2511 = vdwg.mxu0
      %v2512 = vld [vmem:[%s3] sm:$0xf]
      %v2513 = vld [vmem:[%s3 + $0x4] sm:$0xf]
      %v2514 = vld [vmem:[%s3 + $0x8] sm:$0xf]
      %v2515 = vld [vmem:[%s3 + $0xc] sm:$0xf]
      %v2516 = vpack.c.bf16 %v2498, %v2494
      %v2517 = vpack.c.bf16 %v2500, %v2496
      %v2518 = vpack.c.bf16 %v2508, %v2504
      %v2519 = vpack.c.bf16 %v2510, %v2506
      %v2524 = vunpack.c.l.b16 %v2512
      %v2525 = vunpack.c.l.b16 %v2513
      %v2526 = vunpack.c.l.b16 %v2514
      %v2527 = vunpack.c.l.b16 %v2515
      %v2528 = vpack.c.b16 %v2525, %v2524
      %v2529 = vpack.c.b16 %v2527, %v2526
      %v2531 = vsel %vm334, %v2528, 0
      %v2534 = vsel %vm334, %v2529, 0
      %2536 = vmatprep.subr.bf16.mxu0 %v2517
      %2537 = vmatpush1.bf16.msra.mxu0 %v2516
      %2538 = vmatprep.subr.bf16.mxu0 %v2519
      %2539 = vmatpush1.bf16.msra.mxu0 %v2518
      %2540 = vmatprep.subr.bf16.mxu0 0
      %2541 = vmatpush1.bf16.msra.mxu0 0
      %2542 = vmatprep.subr.bf16.mxu0 0
      %2543 = vmatpush1.bf16.msra.mxu0 0
      %2544 = vmatprep.subr.bf16.mxu0 0
      %2545 = vmatpush1.bf16.msra.mxu0 0
      %2546 = vmatprep.subr.bf16.mxu0 0
      %2547 = vmatpush1.bf16.msra.mxu0 0
      %2548 = vmatprep.subr.bf16.mxu0 0
      %2549 = vmatpush1.bf16.msra.mxu0 0
      %2550 = vmatprep.subr.bf16.mxu0 0
      %2551 = vmatpush1.bf16.msra.mxu0 0
      %2552 = vmatprep.subr.bf16.mxu0 0
      %2553 = vmatpush1.bf16.msra.mxu0 0
      %2554 = vmatprep.subr.bf16.mxu0 0
      %2555 = vmatpush1.bf16.msra.mxu0 0
      %2556 = vmatprep.subr.bf16.mxu0 0
      %2557 = vmatpush1.bf16.msra.mxu0 0
      %2558 = vmatprep.subr.bf16.mxu0 0
      %2559 = vmatpush1.bf16.msra.mxu0 0
      %2560 = vmatprep.subr.bf16.mxu0 0
      %2561 = vmatpush1.bf16.msra.mxu0 0
      %2562 = vmatprep.subr.bf16.mxu0 0
      %2563 = vmatpush1.bf16.msra.mxu0 0
      %2564 = vmatprep.subr.bf16.mxu0 0
      %2565 = vmatpush1.bf16.msra.mxu0 0
      %2566 = vmatprep.subr.bf16.mxu0 0
      %2567 = vmatpush1.bf16.msra.mxu0 0
      %2568 = vmatprep.mubr.bf16.mxu0 0
      %2569 = vmatmul.mubr.bf16.gmra.mrb[0].mxu0 %v2531
      %v2570 = vpop.f32.mrb[0].mxu0
      %v2571 = vadd.f32 0.0, %v2570
      %v2572 = vpop.f32.mrb[0].mxu0
      %v2573 = vadd.f32 0.0, %v2572
      %v2574 = vpop.f32.mrb[0].mxu0
      %v2575 = vadd.f32 0.0, %v2574
      %v2576 = vpop.f32.mrb[0].mxu0
      %v2577 = vadd.f32 0.0, %v2576
      %2578 = vmatprep.mubr.bf16.mxu0 0
      %2579 = vmatmul.mubr.bf16.gmra.mrb[0].mxu0 %v2534
      %v2580 = vpop.f32.mrb[0].mxu0
      %v2581 = vadd.f32 0.0, %v2580
      %v2582 = vpop.f32.mrb[0].mxu0
      %v2583 = vadd.f32 0.0, %v2582
      %v2584 = vpop.f32.mrb[0].mxu0
      %v2585 = vadd.f32 0.0, %v2584
      %v2586 = vpop.f32.mrb[0].mxu0
      %v2587 = vadd.f32 0.0, %v2586
      %2588 = vdwg.mxu0
      %2589 = vst [vmem:[%s278] sm:$0xff] %v2571
      %2590 = vst [vmem:[%s278 + $0x8] sm:$0xff] %v2573
      %2591 = vst [vmem:[%s278 + $0x10] sm:$0xff] %v2575
      %2592 = vst [vmem:[%s278 + $0x18] sm:$0xff] %v2577
      %2593 = vst [vmem:[%s278 + $0x20] sm:$0xff] %v2581
      %2594 = vst [vmem:[%s278 + $0x28] sm:$0xff] %v2583
      %2595 = vst [vmem:[%s278 + $0x30] sm:$0xff] %v2585
      %2596 = vst [vmem:[%s278 + $0x38] sm:$0xff] %v2587
      %p2597 = scmp.lt.s32.totalorder %s18, 1
      %s2598 = scalar_select %p2597, %s18, 1
      %s2599 = smul.addr %s2598, 8
      %s2600 = smul.addr %s2599, 8
      %s2601 = scalar_lea.vmem %s7, %s2600
      // Predicated region
      $region49: #{attention_forward.1} parent=47 // pred_check
        %p2602 = pneg %p188
      $region50: #{attention_forward.1} parent=47 // pred_check_branch
        %2604 = sbr.rel (%p2602) target = $region52
      $region51: #{attention_forward.1} parent=47 // pred_region
        _
      $region52: #{attention_forward.1} parent=47 // pred_fallthru
        _
    $region48: #{attention_forward.1} parent=5 // pred_fallthru
      _
    %p2605 = scmp.le.s32.totalorder 2, %s13
    // Predicated region
    $region53: #{attention_forward.1} parent=5 // pred_check
      %p2606 = pneg %p2605
    $region54: #{attention_forward.1} parent=5 // pred_check_branch
      %2608 = sbr.rel (%p2606) target = $region56
    $region55: #{attention_forward.1} parent=5 // pred_region
      %s2609 = ssub.s32 %s13, 2
      // Predicated region
      $region57: #{attention_forward.1} parent=55 // pred_check
        %p2610 = pneg %p194
      $region58: #{attention_forward.1} parent=55 // pred_check_branch
        %2612 = sbr.rel (%p2610) target = $region60
      $region59: #{attention_forward.1} parent=55 // pred_region
        %p2613 = scmp.lt.s32.totalorder %s19, 1
        %s2614 = scalar_select %p2613, %s19, 1
        %s2615 = smul.addr %s2614, 8
        %s2616 = smul.addr %s2615, 8
        %s2617 = scalar_lea.vmem %s7, %s2616
      $region60: #{attention_forward.1} parent=55 // pred_fallthru
        _
    $region56: #{attention_forward.1} parent=5 // pred_fallthru
      _
  $region6: #{attention_forward.1} parent=0 // loop_footer
    %s17 = sadd.s32 1, %s13
  $region7: #{attention_forward.1} parent=0 // loop_footer_branch
    %12 = sbr.rel target = $region3
  $region8: #{attention_forward.1} parent=0 // loop_exit
    _

</llo_original>
